<compile_context>
chip_gen: v6e
topology: v6e:2x2x1
jax: 0.10.0
libtpu: 0.0.40
codegen_flags: <defaults>
</compile_context>

<pallas_src>
import jax
import jax.numpy as jnp
from jax.experimental import pallas as pl
from jax.experimental.pallas import tpu as pltpu

LANES = 128
CHUNK_SUBLANES = 8            # 8 sublanes x 128 lanes = 1 f32 vreg per feature
MAX_TILE_ROWS = 2048          # 2048 rows x 128 lanes = 256K batch elems / block
                              #   -> ~2 MiB per direction (f32, input_dim=2);
                              #   double-buffered in+out stays < 32 MiB VMEM.
VMEM_LIMIT_BYTES = 32 * 1024 * 1024


def _round_up(x, m):
    return (x + m - 1) // m * m


def _choose_tiling(batch):
    """Pick (tile_rows, num_tiles) for a batch of `batch` elements."""
    rows_needed = max(pl.cdiv(batch, LANES), 1)       # 128-lane rows required
    if rows_needed <= CHUNK_SUBLANES:
        tile_rows = CHUNK_SUBLANES                    # one minimal block
    else:
        # As large as possible, but keep >= 2 grid steps (v7x has 2 TCs) and
        # cap per-block VMEM for v7x's 64 MiB physical VMEM.
        tile_rows = min(MAX_TILE_ROWS,
                        _round_up(pl.cdiv(rows_needed, 2), CHUNK_SUBLANES))
    num_tiles = pl.cdiv(rows_needed, tile_rows)
    return tile_rows, num_tiles


def make_autoencoder_kernel(input_dim, hidden_dim, latent_dim, tile_rows,
                            chunk=CHUNK_SUBLANES):
    """Kernel body for fixed (tiny) feature dims and a given batch tile."""
    assert tile_rows % chunk == 0
    n_chunks = tile_rows // chunk

    def kernel(x_ref,
               w1_ref, b1_ref,   # encoder Linear(input_dim, hidden_dim)
               w2_ref, b2_ref,   # encoder Linear(hidden_dim, latent_dim)
               w3_ref, b3_ref,   # decoder Linear(latent_dim, hidden_dim)
               w4_ref, b4_ref,   # decoder Linear(hidden_dim, input_dim)
               out_ref):
        # x_ref / out_ref: [input_dim, tile_rows, 128]  (batch on sublane+lane)

        # Hoist all weight/bias scalar reads out of the chunk loop so SMEM
        # loads are not repeated every iteration (they stay sreg-resident).
        def read(w_ref, b_ref, out_dim, in_dim):
            w = [[w_ref[o, k] for k in range(in_dim)] for o in range(out_dim)]
            b = [b_ref[o] for o in range(out_dim)]
            return w, b

        w1, b1 = read(w1_ref, b1_ref, hidden_dim, input_dim)
        w2, b2 = read(w2_ref, b2_ref, latent_dim, hidden_dim)
        w3, b3 = read(w3_ref, b3_ref, hidden_dim, latent_dim)
        w4, b4 = read(w4_ref, b4_ref, input_dim, hidden_dim)

        def layer(rows_in, w, b, out_dim, in_dim, activate):
            # rows_in: list (len=in_dim) of [chunk, 128] f32 arrays (vregs).
            rows_out = []
            for o in range(out_dim):
                acc = rows_in[0] * w[o][0]            # VPU scalar-broadcast mul
                for k in range(1, in_dim):
                    acc = acc + rows_in[k] * w[o][k]
                acc = acc + b[o]
                rows_out.append(jnp.tanh(acc) if activate else acc)  # EUP
            return rows_out

        # Chunked loop over the batch-row (sublane) axis: the full 4-layer
        # chain is evaluated per 8-sublane chunk so intermediates live in
        # vregs instead of round-tripping VMEM.
        @pl.loop(0, n_chunks)
        def _(c):
            r0 = pl.multiple_of(c * chunk, chunk)
            xs = [x_ref[k, pl.ds(r0, chunk), :].astype(jnp.float32)
                  for k in range(input_dim)]
            h1 = layer(xs, w1, b1, hidden_dim, input_dim, True)
            z = layer(h1, w2, b2, latent_dim, hidden_dim, True)
            h2 = layer(z, w3, b3, hidden_dim, latent_dim, True)
            y = layer(h2, w4, b4, input_dim, hidden_dim, False)
            for o in range(input_dim):
                out_ref[o, pl.ds(r0, chunk), :] = y[o].astype(out_ref.dtype)

    return kernel


def autoencoder_forward_feature_major(x_fm, params):
    """Core entry point.  x_fm: [input_dim, B] -> [input_dim, B].

    No transposes: the feature-major layout maps batch straight onto the
    (sublane, lane) axes via a layout-preserving reshape.
    """
    w1, b1 = params["w1"], params["b1"]  # (hidden, input), (hidden,)
    w2, b2 = params["w2"], params["b2"]  # (latent, hidden), (latent,)
    w3, b3 = params["w3"], params["b3"]  # (hidden, latent), (hidden,)
    w4, b4 = params["w4"], params["b4"]  # (input, hidden), (input,)

    input_dim, B = x_fm.shape
    hidden_dim = w1.shape[0]
    latent_dim = w2.shape[0]
    assert w1.shape == (hidden_dim, input_dim)
    assert w2.shape == (latent_dim, hidden_dim)
    assert w3.shape == (hidden_dim, latent_dim)
    assert w4.shape == (input_dim, hidden_dim)

    tile_rows, num_tiles = _choose_tiling(B)
    B_pad = num_tiles * tile_rows * LANES
    if B_pad != B:
        x_fm = jnp.pad(x_fm, ((0, 0), (0, B_pad - B)))
    total_rows = B_pad // LANES

    # Layout-preserving reshape (contiguous, feature-major): [f, rows, 128].
    x3 = x_fm.reshape(input_dim, total_rows, LANES)

    kernel = make_autoencoder_kernel(input_dim, hidden_dim, latent_dim,
                                     tile_rows)

    smem_spec = pl.BlockSpec(memory_space=pltpu.MemorySpace.SMEM)
    act_spec = pl.BlockSpec((input_dim, tile_rows, LANES), lambda i: (0, i, 0))

    y3 = pl.pallas_call(
        kernel,
        out_shape=jax.ShapeDtypeStruct((input_dim, total_rows, LANES),
                                       x_fm.dtype),
        grid_spec=pl.GridSpec(
            grid=(num_tiles,),
            in_specs=[
                act_spec,                 # x block (lane-dense, auto-pipelined)
                smem_spec, smem_spec,     # w1, b1
                smem_spec, smem_spec,     # w2, b2
                smem_spec, smem_spec,     # w3, b3
                smem_spec, smem_spec,     # w4, b4
            ],
            out_specs=act_spec,
        ),
        compiler_params=pltpu.CompilerParams(
            dimension_semantics=("parallel",),
            vmem_limit_bytes=VMEM_LIMIT_BYTES),
    )(x3, w1, b1, w2, b2, w3, b3, w4, b4)

    return y3.reshape(input_dim, B_pad)[:, :B]


def autoencoder_forward(x, params):
    """PyTorch-interface wrapper: x [B, input_dim] -> [B, input_dim].

    The two transposes here are extra HBM passes (layout plumbing only);
    prefer `autoencoder_forward_feature_major` when the caller can supply /
    consume feature-major activations.
    """
    return autoencoder_forward_feature_major(x.T, params).T


def init_params(key, input_dim=2, latent_dim=1, hidden_dim=10,
                dtype=jnp.float32):
    """Deterministic init mimicking nn.Linear default U(-1/sqrt(fan_in), +).

    Weights kept in PyTorch layout: W (out_dim, in_dim), b (out_dim,).
    """
    def linear(k, fan_in, fan_out):
        kw, kb = jax.random.split(k)
        bound = 1.0 / float(fan_in) ** 0.5
        w = jax.random.uniform(kw, (fan_out, fan_in), dtype, -bound, bound)
        b = jax.random.uniform(kb, (fan_out,), dtype, -bound, bound)
        return w, b

    k1, k2, k3, k4 = jax.random.split(key, 4)
    w1, b1 = linear(k1, input_dim, hidden_dim)   # encoder.0
    w2, b2 = linear(k2, hidden_dim, latent_dim)  # encoder.2
    w3, b3 = linear(k3, latent_dim, hidden_dim)  # decoder.0
    w4, b4 = linear(k4, hidden_dim, input_dim)   # decoder.2
    return {"w1": w1, "b1": b1, "w2": w2, "b2": b2,
            "w3": w3, "b3": b3, "w4": w4, "b4": b4}


def reference_forward(x, p):
    h1 = jnp.tanh(x @ p["w1"].T + p["b1"])
    z = jnp.tanh(h1 @ p["w2"].T + p["b2"])
    h2 = jnp.tanh(z @ p["w3"].T + p["b3"])
    return h2 @ p["w4"].T + p["b4"]


if __name__ == "__main__":
    key = jax.random.PRNGKey(0)
    k_x, k_p = jax.random.split(key)

    input_dim, latent_dim, hidden_dim = 2, 1, 10
    params = init_params(k_p, input_dim, latent_dim, hidden_dim)

    # Case 1: feature-major path (no external transposes).
    # batch=4096 -> tile_rows=16, num_tiles=2 (both v7x cores busy),
    # 2 chunks of 8 sublanes per tile.
    batch = 4096
    x = jax.random.normal(k_x, (batch, input_dim), jnp.float32)
    x_fm = jnp.asarray(x.T)   # feature-major [input_dim, B]
    out_fm = jax.block_until_ready(
        autoencoder_forward_feature_major(x_fm, params))
    ref = reference_forward(x, params)
    assert out_fm.shape == (input_dim, batch), out_fm.shape
    assert jnp.allclose(out_fm.T, ref, atol=1e-5, rtol=1e-5), \
        f"max abs err {jnp.max(jnp.abs(out_fm.T - ref))}"

    # Case 2: tiny batch through the PyTorch-interface (batch-major) wrapper;
    # padded up to one minimal 1024-row block, grid=(1,), padded rows dropped.
    x_small = x[:16]
    out_small = jax.block_until_ready(autoencoder_forward(x_small, params))
    ref_small = reference_forward(x_small, params)
    assert out_small.shape == (16, input_dim), out_small.shape
    assert jnp.allclose(out_small, ref_small, atol=1e-5, rtol=1e-5), \
        f"max abs err {jnp.max(jnp.abs(out_small - ref_small))}"

    print("KERNEL_OK")
</pallas_src>

<mosaic_0001>
module attributes {stable_mosaic.version = 11 : i64} {
  func.func @kernel(%arg0: i32, %arg1: memref<2x16x128xf32, #tpu.memory_space<vmem>>, %arg2: memref<10x2xf32, #tpu.memory_space<smem>>, %arg3: memref<10xf32, #tpu.memory_space<smem>>, %arg4: memref<1x10xf32, #tpu.memory_space<smem>>, %arg5: memref<1xf32, #tpu.memory_space<smem>>, %arg6: memref<10x1xf32, #tpu.memory_space<smem>>, %arg7: memref<10xf32, #tpu.memory_space<smem>>, %arg8: memref<2x10xf32, #tpu.memory_space<smem>>, %arg9: memref<2xf32, #tpu.memory_space<smem>>, %arg10: memref<2x16x128xf32, #tpu.memory_space<vmem>>) attributes {dimension_semantics = [#tpu.dimension_semantics<parallel>], iteration_bounds = array<i64: 2>, scalar_prefetch = 0 : i64, scratch_operands = 0 : i64, tpu.core_type = #tpu.core_type<tc>, window_params = [{transform_indices = @transform_0, window_bounds = array<i64: 2, 16, 128>}, {transform_indices = @transform_1, window_bounds = array<i64: 10, 2>}, {transform_indices = @transform_2, window_bounds = array<i64: 10>}, {transform_indices = @transform_3, window_bounds = array<i64: 1, 10>}, {transform_indices = @transform_4, window_bounds = array<i64: 1>}, {transform_indices = @transform_5, window_bounds = array<i64: 10, 1>}, {transform_indices = @transform_6, window_bounds = array<i64: 10>}, {transform_indices = @transform_7, window_bounds = array<i64: 2, 10>}, {transform_indices = @transform_8, window_bounds = array<i64: 2>}, {transform_indices = @transform_9, window_bounds = array<i64: 2, 16, 128>}]} {
    %c0 = arith.constant 0 : index
    %c0_0 = arith.constant 0 : index
    %0 = memref.load %arg2[%c0, %c0_0] : memref<10x2xf32, #tpu.memory_space<smem>>
    %c0_1 = arith.constant 0 : index
    %c1 = arith.constant 1 : index
    %1 = memref.load %arg2[%c0_1, %c1] : memref<10x2xf32, #tpu.memory_space<smem>>
    %c1_2 = arith.constant 1 : index
    %c0_3 = arith.constant 0 : index
    %2 = memref.load %arg2[%c1_2, %c0_3] : memref<10x2xf32, #tpu.memory_space<smem>>
    %c1_4 = arith.constant 1 : index
    %c1_5 = arith.constant 1 : index
    %3 = memref.load %arg2[%c1_4, %c1_5] : memref<10x2xf32, #tpu.memory_space<smem>>
    %c2 = arith.constant 2 : index
    %c0_6 = arith.constant 0 : index
    %4 = memref.load %arg2[%c2, %c0_6] : memref<10x2xf32, #tpu.memory_space<smem>>
    %c2_7 = arith.constant 2 : index
    %c1_8 = arith.constant 1 : index
    %5 = memref.load %arg2[%c2_7, %c1_8] : memref<10x2xf32, #tpu.memory_space<smem>>
    %c3 = arith.constant 3 : index
    %c0_9 = arith.constant 0 : index
    %6 = memref.load %arg2[%c3, %c0_9] : memref<10x2xf32, #tpu.memory_space<smem>>
    %c3_10 = arith.constant 3 : index
    %c1_11 = arith.constant 1 : index
    %7 = memref.load %arg2[%c3_10, %c1_11] : memref<10x2xf32, #tpu.memory_space<smem>>
    %c4 = arith.constant 4 : index
    %c0_12 = arith.constant 0 : index
    %8 = memref.load %arg2[%c4, %c0_12] : memref<10x2xf32, #tpu.memory_space<smem>>
    %c4_13 = arith.constant 4 : index
    %c1_14 = arith.constant 1 : index
    %9 = memref.load %arg2[%c4_13, %c1_14] : memref<10x2xf32, #tpu.memory_space<smem>>
    %c5 = arith.constant 5 : index
    %c0_15 = arith.constant 0 : index
    %10 = memref.load %arg2[%c5, %c0_15] : memref<10x2xf32, #tpu.memory_space<smem>>
    %c5_16 = arith.constant 5 : index
    %c1_17 = arith.constant 1 : index
    %11 = memref.load %arg2[%c5_16, %c1_17] : memref<10x2xf32, #tpu.memory_space<smem>>
    %c6 = arith.constant 6 : index
    %c0_18 = arith.constant 0 : index
    %12 = memref.load %arg2[%c6, %c0_18] : memref<10x2xf32, #tpu.memory_space<smem>>
    %c6_19 = arith.constant 6 : index
    %c1_20 = arith.constant 1 : index
    %13 = memref.load %arg2[%c6_19, %c1_20] : memref<10x2xf32, #tpu.memory_space<smem>>
    %c7 = arith.constant 7 : index
    %c0_21 = arith.constant 0 : index
    %14 = memref.load %arg2[%c7, %c0_21] : memref<10x2xf32, #tpu.memory_space<smem>>
    %c7_22 = arith.constant 7 : index
    %c1_23 = arith.constant 1 : index
    %15 = memref.load %arg2[%c7_22, %c1_23] : memref<10x2xf32, #tpu.memory_space<smem>>
    %c8 = arith.constant 8 : index
    %c0_24 = arith.constant 0 : index
    %16 = memref.load %arg2[%c8, %c0_24] : memref<10x2xf32, #tpu.memory_space<smem>>
    %c8_25 = arith.constant 8 : index
    %c1_26 = arith.constant 1 : index
    %17 = memref.load %arg2[%c8_25, %c1_26] : memref<10x2xf32, #tpu.memory_space<smem>>
    %c9 = arith.constant 9 : index
    %c0_27 = arith.constant 0 : index
    %18 = memref.load %arg2[%c9, %c0_27] : memref<10x2xf32, #tpu.memory_space<smem>>
    %c9_28 = arith.constant 9 : index
    %c1_29 = arith.constant 1 : index
    %19 = memref.load %arg2[%c9_28, %c1_29] : memref<10x2xf32, #tpu.memory_space<smem>>
    %c0_30 = arith.constant 0 : index
    %20 = memref.load %arg3[%c0_30] : memref<10xf32, #tpu.memory_space<smem>>
    %c1_31 = arith.constant 1 : index
    %21 = memref.load %arg3[%c1_31] : memref<10xf32, #tpu.memory_space<smem>>
    %c2_32 = arith.constant 2 : index
    %22 = memref.load %arg3[%c2_32] : memref<10xf32, #tpu.memory_space<smem>>
    %c3_33 = arith.constant 3 : index
    %23 = memref.load %arg3[%c3_33] : memref<10xf32, #tpu.memory_space<smem>>
    %c4_34 = arith.constant 4 : index
    %24 = memref.load %arg3[%c4_34] : memref<10xf32, #tpu.memory_space<smem>>
    %c5_35 = arith.constant 5 : index
    %25 = memref.load %arg3[%c5_35] : memref<10xf32, #tpu.memory_space<smem>>
    %c6_36 = arith.constant 6 : index
    %26 = memref.load %arg3[%c6_36] : memref<10xf32, #tpu.memory_space<smem>>
    %c7_37 = arith.constant 7 : index
    %27 = memref.load %arg3[%c7_37] : memref<10xf32, #tpu.memory_space<smem>>
    %c8_38 = arith.constant 8 : index
    %28 = memref.load %arg3[%c8_38] : memref<10xf32, #tpu.memory_space<smem>>
    %c9_39 = arith.constant 9 : index
    %29 = memref.load %arg3[%c9_39] : memref<10xf32, #tpu.memory_space<smem>>
    %c0_40 = arith.constant 0 : index
    %c0_41 = arith.constant 0 : index
    %30 = memref.load %arg4[%c0_40, %c0_41] : memref<1x10xf32, #tpu.memory_space<smem>>
    %c0_42 = arith.constant 0 : index
    %c1_43 = arith.constant 1 : index
    %31 = memref.load %arg4[%c0_42, %c1_43] : memref<1x10xf32, #tpu.memory_space<smem>>
    %c0_44 = arith.constant 0 : index
    %c2_45 = arith.constant 2 : index
    %32 = memref.load %arg4[%c0_44, %c2_45] : memref<1x10xf32, #tpu.memory_space<smem>>
    %c0_46 = arith.constant 0 : index
    %c3_47 = arith.constant 3 : index
    %33 = memref.load %arg4[%c0_46, %c3_47] : memref<1x10xf32, #tpu.memory_space<smem>>
    %c0_48 = arith.constant 0 : index
    %c4_49 = arith.constant 4 : index
    %34 = memref.load %arg4[%c0_48, %c4_49] : memref<1x10xf32, #tpu.memory_space<smem>>
    %c0_50 = arith.constant 0 : index
    %c5_51 = arith.constant 5 : index
    %35 = memref.load %arg4[%c0_50, %c5_51] : memref<1x10xf32, #tpu.memory_space<smem>>
    %c0_52 = arith.constant 0 : index
    %c6_53 = arith.constant 6 : index
    %36 = memref.load %arg4[%c0_52, %c6_53] : memref<1x10xf32, #tpu.memory_space<smem>>
    %c0_54 = arith.constant 0 : index
    %c7_55 = arith.constant 7 : index
    %37 = memref.load %arg4[%c0_54, %c7_55] : memref<1x10xf32, #tpu.memory_space<smem>>
    %c0_56 = arith.constant 0 : index
    %c8_57 = arith.constant 8 : index
    %38 = memref.load %arg4[%c0_56, %c8_57] : memref<1x10xf32, #tpu.memory_space<smem>>
    %c0_58 = arith.constant 0 : index
    %c9_59 = arith.constant 9 : index
    %39 = memref.load %arg4[%c0_58, %c9_59] : memref<1x10xf32, #tpu.memory_space<smem>>
    %c0_60 = arith.constant 0 : index
    %40 = memref.load %arg5[%c0_60] : memref<1xf32, #tpu.memory_space<smem>>
    %c0_61 = arith.constant 0 : index
    %c0_62 = arith.constant 0 : index
    %41 = memref.load %arg6[%c0_61, %c0_62] : memref<10x1xf32, #tpu.memory_space<smem>>
    %c1_63 = arith.constant 1 : index
    %c0_64 = arith.constant 0 : index
    %42 = memref.load %arg6[%c1_63, %c0_64] : memref<10x1xf32, #tpu.memory_space<smem>>
    %c2_65 = arith.constant 2 : index
    %c0_66 = arith.constant 0 : index
    %43 = memref.load %arg6[%c2_65, %c0_66] : memref<10x1xf32, #tpu.memory_space<smem>>
    %c3_67 = arith.constant 3 : index
    %c0_68 = arith.constant 0 : index
    %44 = memref.load %arg6[%c3_67, %c0_68] : memref<10x1xf32, #tpu.memory_space<smem>>
    %c4_69 = arith.constant 4 : index
    %c0_70 = arith.constant 0 : index
    %45 = memref.load %arg6[%c4_69, %c0_70] : memref<10x1xf32, #tpu.memory_space<smem>>
    %c5_71 = arith.constant 5 : index
    %c0_72 = arith.constant 0 : index
    %46 = memref.load %arg6[%c5_71, %c0_72] : memref<10x1xf32, #tpu.memory_space<smem>>
    %c6_73 = arith.constant 6 : index
    %c0_74 = arith.constant 0 : index
    %47 = memref.load %arg6[%c6_73, %c0_74] : memref<10x1xf32, #tpu.memory_space<smem>>
    %c7_75 = arith.constant 7 : index
    %c0_76 = arith.constant 0 : index
    %48 = memref.load %arg6[%c7_75, %c0_76] : memref<10x1xf32, #tpu.memory_space<smem>>
    %c8_77 = arith.constant 8 : index
    %c0_78 = arith.constant 0 : index
    %49 = memref.load %arg6[%c8_77, %c0_78] : memref<10x1xf32, #tpu.memory_space<smem>>
    %c9_79 = arith.constant 9 : index
    %c0_80 = arith.constant 0 : index
    %50 = memref.load %arg6[%c9_79, %c0_80] : memref<10x1xf32, #tpu.memory_space<smem>>
    %c0_81 = arith.constant 0 : index
    %51 = memref.load %arg7[%c0_81] : memref<10xf32, #tpu.memory_space<smem>>
    %c1_82 = arith.constant 1 : index
    %52 = memref.load %arg7[%c1_82] : memref<10xf32, #tpu.memory_space<smem>>
    %c2_83 = arith.constant 2 : index
    %53 = memref.load %arg7[%c2_83] : memref<10xf32, #tpu.memory_space<smem>>
    %c3_84 = arith.constant 3 : index
    %54 = memref.load %arg7[%c3_84] : memref<10xf32, #tpu.memory_space<smem>>
    %c4_85 = arith.constant 4 : index
    %55 = memref.load %arg7[%c4_85] : memref<10xf32, #tpu.memory_space<smem>>
    %c5_86 = arith.constant 5 : index
    %56 = memref.load %arg7[%c5_86] : memref<10xf32, #tpu.memory_space<smem>>
    %c6_87 = arith.constant 6 : index
    %57 = memref.load %arg7[%c6_87] : memref<10xf32, #tpu.memory_space<smem>>
    %c7_88 = arith.constant 7 : index
    %58 = memref.load %arg7[%c7_88] : memref<10xf32, #tpu.memory_space<smem>>
    %c8_89 = arith.constant 8 : index
    %59 = memref.load %arg7[%c8_89] : memref<10xf32, #tpu.memory_space<smem>>
    %c9_90 = arith.constant 9 : index
    %60 = memref.load %arg7[%c9_90] : memref<10xf32, #tpu.memory_space<smem>>
    %c0_91 = arith.constant 0 : index
    %c0_92 = arith.constant 0 : index
    %61 = memref.load %arg8[%c0_91, %c0_92] : memref<2x10xf32, #tpu.memory_space<smem>>
    %c0_93 = arith.constant 0 : index
    %c1_94 = arith.constant 1 : index
    %62 = memref.load %arg8[%c0_93, %c1_94] : memref<2x10xf32, #tpu.memory_space<smem>>
    %c0_95 = arith.constant 0 : index
    %c2_96 = arith.constant 2 : index
    %63 = memref.load %arg8[%c0_95, %c2_96] : memref<2x10xf32, #tpu.memory_space<smem>>
    %c0_97 = arith.constant 0 : index
    %c3_98 = arith.constant 3 : index
    %64 = memref.load %arg8[%c0_97, %c3_98] : memref<2x10xf32, #tpu.memory_space<smem>>
    %c0_99 = arith.constant 0 : index
    %c4_100 = arith.constant 4 : index
    %65 = memref.load %arg8[%c0_99, %c4_100] : memref<2x10xf32, #tpu.memory_space<smem>>
    %c0_101 = arith.constant 0 : index
    %c5_102 = arith.constant 5 : index
    %66 = memref.load %arg8[%c0_101, %c5_102] : memref<2x10xf32, #tpu.memory_space<smem>>
    %c0_103 = arith.constant 0 : index
    %c6_104 = arith.constant 6 : index
    %67 = memref.load %arg8[%c0_103, %c6_104] : memref<2x10xf32, #tpu.memory_space<smem>>
    %c0_105 = arith.constant 0 : index
    %c7_106 = arith.constant 7 : index
    %68 = memref.load %arg8[%c0_105, %c7_106] : memref<2x10xf32, #tpu.memory_space<smem>>
    %c0_107 = arith.constant 0 : index
    %c8_108 = arith.constant 8 : index
    %69 = memref.load %arg8[%c0_107, %c8_108] : memref<2x10xf32, #tpu.memory_space<smem>>
    %c0_109 = arith.constant 0 : index
    %c9_110 = arith.constant 9 : index
    %70 = memref.load %arg8[%c0_109, %c9_110] : memref<2x10xf32, #tpu.memory_space<smem>>
    %c1_111 = arith.constant 1 : index
    %c0_112 = arith.constant 0 : index
    %71 = memref.load %arg8[%c1_111, %c0_112] : memref<2x10xf32, #tpu.memory_space<smem>>
    %c1_113 = arith.constant 1 : index
    %c1_114 = arith.constant 1 : index
    %72 = memref.load %arg8[%c1_113, %c1_114] : memref<2x10xf32, #tpu.memory_space<smem>>
    %c1_115 = arith.constant 1 : index
    %c2_116 = arith.constant 2 : index
    %73 = memref.load %arg8[%c1_115, %c2_116] : memref<2x10xf32, #tpu.memory_space<smem>>
    %c1_117 = arith.constant 1 : index
    %c3_118 = arith.constant 3 : index
    %74 = memref.load %arg8[%c1_117, %c3_118] : memref<2x10xf32, #tpu.memory_space<smem>>
    %c1_119 = arith.constant 1 : index
    %c4_120 = arith.constant 4 : index
    %75 = memref.load %arg8[%c1_119, %c4_120] : memref<2x10xf32, #tpu.memory_space<smem>>
    %c1_121 = arith.constant 1 : index
    %c5_122 = arith.constant 5 : index
    %76 = memref.load %arg8[%c1_121, %c5_122] : memref<2x10xf32, #tpu.memory_space<smem>>
    %c1_123 = arith.constant 1 : index
    %c6_124 = arith.constant 6 : index
    %77 = memref.load %arg8[%c1_123, %c6_124] : memref<2x10xf32, #tpu.memory_space<smem>>
    %c1_125 = arith.constant 1 : index
    %c7_126 = arith.constant 7 : index
    %78 = memref.load %arg8[%c1_125, %c7_126] : memref<2x10xf32, #tpu.memory_space<smem>>
    %c1_127 = arith.constant 1 : index
    %c8_128 = arith.constant 8 : index
    %79 = memref.load %arg8[%c1_127, %c8_128] : memref<2x10xf32, #tpu.memory_space<smem>>
    %c1_129 = arith.constant 1 : index
    %c9_130 = arith.constant 9 : index
    %80 = memref.load %arg8[%c1_129, %c9_130] : memref<2x10xf32, #tpu.memory_space<smem>>
    %c0_131 = arith.constant 0 : index
    %81 = memref.load %arg9[%c0_131] : memref<2xf32, #tpu.memory_space<smem>>
    %c1_132 = arith.constant 1 : index
    %82 = memref.load %arg9[%c1_132] : memref<2xf32, #tpu.memory_space<smem>>
    %c0_i32 = arith.constant 0 : i32
    %c2_i32 = arith.constant 2 : i32
    %83 = arith.addi %c0_i32, %c2_i32 : i32
    %c1_i32 = arith.constant 1 : i32
    scf.for %arg11 = %c0_i32 to %83 step %c1_i32  : i32 {
      %c1_i32_134 = arith.constant 1 : i32
      %84 = arith.muli %arg11, %c1_i32_134 : i32
      %c0_i32_135 = arith.constant 0 : i32
      %85 = arith.addi %c0_i32_135, %84 : i32
      %c8_i32 = arith.constant 8 : i32
      %86 = arith.muli %85, %c8_i32 : i32
      %87 = tpu.assume_multiple %86, 8 : i32
      %c0_136 = arith.constant 0 : index
      %88 = arith.index_cast %87 : i32 to index
      %c0_137 = arith.constant 0 : index
      %89 = vector.load %arg1[%c0_136, %88, %c0_137] : memref<2x16x128xf32, #tpu.memory_space<vmem>>, vector<1x8x128xf32>
      %90 = vector.shape_cast %89 : vector<1x8x128xf32> to vector<8x128xf32>
      %c1_138 = arith.constant 1 : index
      %91 = arith.index_cast %87 : i32 to index
      %c0_139 = arith.constant 0 : index
      %92 = vector.load %arg1[%c1_138, %91, %c0_139] : memref<2x16x128xf32, #tpu.memory_space<vmem>>, vector<1x8x128xf32>
      %93 = vector.shape_cast %92 : vector<1x8x128xf32> to vector<8x128xf32>
      %94 = vector.broadcast %0 : f32 to vector<8x128xf32>
      %95 = arith.mulf %90, %94 : vector<8x128xf32>
      %96 = vector.broadcast %1 : f32 to vector<8x128xf32>
      %97 = arith.mulf %93, %96 : vector<8x128xf32>
      %98 = arith.addf %95, %97 : vector<8x128xf32>
      %99 = vector.broadcast %20 : f32 to vector<8x128xf32>
      %100 = arith.addf %98, %99 : vector<8x128xf32>
      %101 = math.tanh %100 : vector<8x128xf32>
      %102 = vector.broadcast %2 : f32 to vector<8x128xf32>
      %103 = arith.mulf %90, %102 : vector<8x128xf32>
      %104 = vector.broadcast %3 : f32 to vector<8x128xf32>
      %105 = arith.mulf %93, %104 : vector<8x128xf32>
      %106 = arith.addf %103, %105 : vector<8x128xf32>
      %107 = vector.broadcast %21 : f32 to vector<8x128xf32>
      %108 = arith.addf %106, %107 : vector<8x128xf32>
      %109 = math.tanh %108 : vector<8x128xf32>
      %110 = vector.broadcast %4 : f32 to vector<8x128xf32>
      %111 = arith.mulf %90, %110 : vector<8x128xf32>
      %112 = vector.broadcast %5 : f32 to vector<8x128xf32>
      %113 = arith.mulf %93, %112 : vector<8x128xf32>
      %114 = arith.addf %111, %113 : vector<8x128xf32>
      %115 = vector.broadcast %22 : f32 to vector<8x128xf32>
      %116 = arith.addf %114, %115 : vector<8x128xf32>
      %117 = math.tanh %116 : vector<8x128xf32>
      %118 = vector.broadcast %6 : f32 to vector<8x128xf32>
      %119 = arith.mulf %90, %118 : vector<8x128xf32>
      %120 = vector.broadcast %7 : f32 to vector<8x128xf32>
      %121 = arith.mulf %93, %120 : vector<8x128xf32>
      %122 = arith.addf %119, %121 : vector<8x128xf32>
      %123 = vector.broadcast %23 : f32 to vector<8x128xf32>
      %124 = arith.addf %122, %123 : vector<8x128xf32>
      %125 = math.tanh %124 : vector<8x128xf32>
      %126 = vector.broadcast %8 : f32 to vector<8x128xf32>
      %127 = arith.mulf %90, %126 : vector<8x128xf32>
      %128 = vector.broadcast %9 : f32 to vector<8x128xf32>
      %129 = arith.mulf %93, %128 : vector<8x128xf32>
      %130 = arith.addf %127, %129 : vector<8x128xf32>
      %131 = vector.broadcast %24 : f32 to vector<8x128xf32>
      %132 = arith.addf %130, %131 : vector<8x128xf32>
      %133 = math.tanh %132 : vector<8x128xf32>
      %134 = vector.broadcast %10 : f32 to vector<8x128xf32>
      %135 = arith.mulf %90, %134 : vector<8x128xf32>
      %136 = vector.broadcast %11 : f32 to vector<8x128xf32>
      %137 = arith.mulf %93, %136 : vector<8x128xf32>
      %138 = arith.addf %135, %137 : vector<8x128xf32>
      %139 = vector.broadcast %25 : f32 to vector<8x128xf32>
      %140 = arith.addf %138, %139 : vector<8x128xf32>
      %141 = math.tanh %140 : vector<8x128xf32>
      %142 = vector.broadcast %12 : f32 to vector<8x128xf32>
      %143 = arith.mulf %90, %142 : vector<8x128xf32>
      %144 = vector.broadcast %13 : f32 to vector<8x128xf32>
      %145 = arith.mulf %93, %144 : vector<8x128xf32>
      %146 = arith.addf %143, %145 : vector<8x128xf32>
      %147 = vector.broadcast %26 : f32 to vector<8x128xf32>
      %148 = arith.addf %146, %147 : vector<8x128xf32>
      %149 = math.tanh %148 : vector<8x128xf32>
      %150 = vector.broadcast %14 : f32 to vector<8x128xf32>
      %151 = arith.mulf %90, %150 : vector<8x128xf32>
      %152 = vector.broadcast %15 : f32 to vector<8x128xf32>
      %153 = arith.mulf %93, %152 : vector<8x128xf32>
      %154 = arith.addf %151, %153 : vector<8x128xf32>
      %155 = vector.broadcast %27 : f32 to vector<8x128xf32>
      %156 = arith.addf %154, %155 : vector<8x128xf32>
      %157 = math.tanh %156 : vector<8x128xf32>
      %158 = vector.broadcast %16 : f32 to vector<8x128xf32>
      %159 = arith.mulf %90, %158 : vector<8x128xf32>
      %160 = vector.broadcast %17 : f32 to vector<8x128xf32>
      %161 = arith.mulf %93, %160 : vector<8x128xf32>
      %162 = arith.addf %159, %161 : vector<8x128xf32>
      %163 = vector.broadcast %28 : f32 to vector<8x128xf32>
      %164 = arith.addf %162, %163 : vector<8x128xf32>
      %165 = math.tanh %164 : vector<8x128xf32>
      %166 = vector.broadcast %18 : f32 to vector<8x128xf32>
      %167 = arith.mulf %90, %166 : vector<8x128xf32>
      %168 = vector.broadcast %19 : f32 to vector<8x128xf32>
      %169 = arith.mulf %93, %168 : vector<8x128xf32>
      %170 = arith.addf %167, %169 : vector<8x128xf32>
      %171 = vector.broadcast %29 : f32 to vector<8x128xf32>
      %172 = arith.addf %170, %171 : vector<8x128xf32>
      %173 = math.tanh %172 : vector<8x128xf32>
      %174 = vector.broadcast %30 : f32 to vector<8x128xf32>
      %175 = arith.mulf %101, %174 : vector<8x128xf32>
      %176 = vector.broadcast %31 : f32 to vector<8x128xf32>
      %177 = arith.mulf %109, %176 : vector<8x128xf32>
      %178 = arith.addf %175, %177 : vector<8x128xf32>
      %179 = vector.broadcast %32 : f32 to vector<8x128xf32>
      %180 = arith.mulf %117, %179 : vector<8x128xf32>
      %181 = arith.addf %178, %180 : vector<8x128xf32>
      %182 = vector.broadcast %33 : f32 to vector<8x128xf32>
      %183 = arith.mulf %125, %182 : vector<8x128xf32>
      %184 = arith.addf %181, %183 : vector<8x128xf32>
      %185 = vector.broadcast %34 : f32 to vector<8x128xf32>
      %186 = arith.mulf %133, %185 : vector<8x128xf32>
      %187 = arith.addf %184, %186 : vector<8x128xf32>
      %188 = vector.broadcast %35 : f32 to vector<8x128xf32>
      %189 = arith.mulf %141, %188 : vector<8x128xf32>
      %190 = arith.addf %187, %189 : vector<8x128xf32>
      %191 = vector.broadcast %36 : f32 to vector<8x128xf32>
      %192 = arith.mulf %149, %191 : vector<8x128xf32>
      %193 = arith.addf %190, %192 : vector<8x128xf32>
      %194 = vector.broadcast %37 : f32 to vector<8x128xf32>
      %195 = arith.mulf %157, %194 : vector<8x128xf32>
      %196 = arith.addf %193, %195 : vector<8x128xf32>
      %197 = vector.broadcast %38 : f32 to vector<8x128xf32>
      %198 = arith.mulf %165, %197 : vector<8x128xf32>
      %199 = arith.addf %196, %198 : vector<8x128xf32>
      %200 = vector.broadcast %39 : f32 to vector<8x128xf32>
      %201 = arith.mulf %173, %200 : vector<8x128xf32>
      %202 = arith.addf %199, %201 : vector<8x128xf32>
      %203 = vector.broadcast %40 : f32 to vector<8x128xf32>
      %204 = arith.addf %202, %203 : vector<8x128xf32>
      %205 = math.tanh %204 : vector<8x128xf32>
      %206 = vector.broadcast %41 : f32 to vector<8x128xf32>
      %207 = arith.mulf %205, %206 : vector<8x128xf32>
      %208 = vector.broadcast %51 : f32 to vector<8x128xf32>
      %209 = arith.addf %207, %208 : vector<8x128xf32>
      %210 = math.tanh %209 : vector<8x128xf32>
      %211 = vector.broadcast %42 : f32 to vector<8x128xf32>
      %212 = arith.mulf %205, %211 : vector<8x128xf32>
      %213 = vector.broadcast %52 : f32 to vector<8x128xf32>
      %214 = arith.addf %212, %213 : vector<8x128xf32>
      %215 = math.tanh %214 : vector<8x128xf32>
      %216 = vector.broadcast %43 : f32 to vector<8x128xf32>
      %217 = arith.mulf %205, %216 : vector<8x128xf32>
      %218 = vector.broadcast %53 : f32 to vector<8x128xf32>
      %219 = arith.addf %217, %218 : vector<8x128xf32>
      %220 = math.tanh %219 : vector<8x128xf32>
      %221 = vector.broadcast %44 : f32 to vector<8x128xf32>
      %222 = arith.mulf %205, %221 : vector<8x128xf32>
      %223 = vector.broadcast %54 : f32 to vector<8x128xf32>
      %224 = arith.addf %222, %223 : vector<8x128xf32>
      %225 = math.tanh %224 : vector<8x128xf32>
      %226 = vector.broadcast %45 : f32 to vector<8x128xf32>
      %227 = arith.mulf %205, %226 : vector<8x128xf32>
      %228 = vector.broadcast %55 : f32 to vector<8x128xf32>
      %229 = arith.addf %227, %228 : vector<8x128xf32>
      %230 = math.tanh %229 : vector<8x128xf32>
      %231 = vector.broadcast %46 : f32 to vector<8x128xf32>
      %232 = arith.mulf %205, %231 : vector<8x128xf32>
      %233 = vector.broadcast %56 : f32 to vector<8x128xf32>
      %234 = arith.addf %232, %233 : vector<8x128xf32>
      %235 = math.tanh %234 : vector<8x128xf32>
      %236 = vector.broadcast %47 : f32 to vector<8x128xf32>
      %237 = arith.mulf %205, %236 : vector<8x128xf32>
      %238 = vector.broadcast %57 : f32 to vector<8x128xf32>
      %239 = arith.addf %237, %238 : vector<8x128xf32>
      %240 = math.tanh %239 : vector<8x128xf32>
      %241 = vector.broadcast %48 : f32 to vector<8x128xf32>
      %242 = arith.mulf %205, %241 : vector<8x128xf32>
      %243 = vector.broadcast %58 : f32 to vector<8x128xf32>
      %244 = arith.addf %242, %243 : vector<8x128xf32>
      %245 = math.tanh %244 : vector<8x128xf32>
      %246 = vector.broadcast %49 : f32 to vector<8x128xf32>
      %247 = arith.mulf %205, %246 : vector<8x128xf32>
      %248 = vector.broadcast %59 : f32 to vector<8x128xf32>
      %249 = arith.addf %247, %248 : vector<8x128xf32>
      %250 = math.tanh %249 : vector<8x128xf32>
      %251 = vector.broadcast %50 : f32 to vector<8x128xf32>
      %252 = arith.mulf %205, %251 : vector<8x128xf32>
      %253 = vector.broadcast %60 : f32 to vector<8x128xf32>
      %254 = arith.addf %252, %253 : vector<8x128xf32>
      %255 = math.tanh %254 : vector<8x128xf32>
      %256 = vector.broadcast %61 : f32 to vector<8x128xf32>
      %257 = arith.mulf %210, %256 : vector<8x128xf32>
      %258 = vector.broadcast %62 : f32 to vector<8x128xf32>
      %259 = arith.mulf %215, %258 : vector<8x128xf32>
      %260 = arith.addf %257, %259 : vector<8x128xf32>
      %261 = vector.broadcast %63 : f32 to vector<8x128xf32>
      %262 = arith.mulf %220, %261 : vector<8x128xf32>
      %263 = arith.addf %260, %262 : vector<8x128xf32>
      %264 = vector.broadcast %64 : f32 to vector<8x128xf32>
      %265 = arith.mulf %225, %264 : vector<8x128xf32>
      %266 = arith.addf %263, %265 : vector<8x128xf32>
      %267 = vector.broadcast %65 : f32 to vector<8x128xf32>
      %268 = arith.mulf %230, %267 : vector<8x128xf32>
      %269 = arith.addf %266, %268 : vector<8x128xf32>
      %270 = vector.broadcast %66 : f32 to vector<8x128xf32>
      %271 = arith.mulf %235, %270 : vector<8x128xf32>
      %272 = arith.addf %269, %271 : vector<8x128xf32>
      %273 = vector.broadcast %67 : f32 to vector<8x128xf32>
      %274 = arith.mulf %240, %273 : vector<8x128xf32>
      %275 = arith.addf %272, %274 : vector<8x128xf32>
      %276 = vector.broadcast %68 : f32 to vector<8x128xf32>
      %277 = arith.mulf %245, %276 : vector<8x128xf32>
      %278 = arith.addf %275, %277 : vector<8x128xf32>
      %279 = vector.broadcast %69 : f32 to vector<8x128xf32>
      %280 = arith.mulf %250, %279 : vector<8x128xf32>
      %281 = arith.addf %278, %280 : vector<8x128xf32>
      %282 = vector.broadcast %70 : f32 to vector<8x128xf32>
      %283 = arith.mulf %255, %282 : vector<8x128xf32>
      %284 = arith.addf %281, %283 : vector<8x128xf32>
      %285 = vector.broadcast %81 : f32 to vector<8x128xf32>
      %286 = arith.addf %284, %285 : vector<8x128xf32>
      %287 = vector.broadcast %71 : f32 to vector<8x128xf32>
      %288 = arith.mulf %210, %287 : vector<8x128xf32>
      %289 = vector.broadcast %72 : f32 to vector<8x128xf32>
      %290 = arith.mulf %215, %289 : vector<8x128xf32>
      %291 = arith.addf %288, %290 : vector<8x128xf32>
      %292 = vector.broadcast %73 : f32 to vector<8x128xf32>
      %293 = arith.mulf %220, %292 : vector<8x128xf32>
      %294 = arith.addf %291, %293 : vector<8x128xf32>
      %295 = vector.broadcast %74 : f32 to vector<8x128xf32>
      %296 = arith.mulf %225, %295 : vector<8x128xf32>
      %297 = arith.addf %294, %296 : vector<8x128xf32>
      %298 = vector.broadcast %75 : f32 to vector<8x128xf32>
      %299 = arith.mulf %230, %298 : vector<8x128xf32>
      %300 = arith.addf %297, %299 : vector<8x128xf32>
      %301 = vector.broadcast %76 : f32 to vector<8x128xf32>
      %302 = arith.mulf %235, %301 : vector<8x128xf32>
      %303 = arith.addf %300, %302 : vector<8x128xf32>
      %304 = vector.broadcast %77 : f32 to vector<8x128xf32>
      %305 = arith.mulf %240, %304 : vector<8x128xf32>
      %306 = arith.addf %303, %305 : vector<8x128xf32>
      %307 = vector.broadcast %78 : f32 to vector<8x128xf32>
      %308 = arith.mulf %245, %307 : vector<8x128xf32>
      %309 = arith.addf %306, %308 : vector<8x128xf32>
      %310 = vector.broadcast %79 : f32 to vector<8x128xf32>
      %311 = arith.mulf %250, %310 : vector<8x128xf32>
      %312 = arith.addf %309, %311 : vector<8x128xf32>
      %313 = vector.broadcast %80 : f32 to vector<8x128xf32>
      %314 = arith.mulf %255, %313 : vector<8x128xf32>
      %315 = arith.addf %312, %314 : vector<8x128xf32>
      %316 = vector.broadcast %82 : f32 to vector<8x128xf32>
      %317 = arith.addf %315, %316 : vector<8x128xf32>
      %c0_140 = arith.constant 0 : index
      %318 = arith.index_cast %87 : i32 to index
      %c0_141 = arith.constant 0 : index
      %319 = vector.load %arg10[%c0_140, %318, %c0_141] : memref<2x16x128xf32, #tpu.memory_space<vmem>>, vector<1x8x128xf32>
      %320 = vector.shape_cast %319 : vector<1x8x128xf32> to vector<8x128xf32>
      %321 = vector.shape_cast %286 : vector<8x128xf32> to vector<1x8x128xf32>
      tpu.vector_store %arg10[%c0_140, %318, %c0_141], %321 {strides = array<i32>} : memref<2x16x128xf32, #tpu.memory_space<vmem>>, vector<1x8x128xf32>,
      %c1_142 = arith.constant 1 : index
      %322 = arith.index_cast %87 : i32 to index
      %c0_143 = arith.constant 0 : index
      %323 = vector.load %arg10[%c1_142, %322, %c0_143] : memref<2x16x128xf32, #tpu.memory_space<vmem>>, vector<1x8x128xf32>
      %324 = vector.shape_cast %323 : vector<1x8x128xf32> to vector<8x128xf32>
      %325 = vector.shape_cast %317 : vector<8x128xf32> to vector<1x8x128xf32>
      tpu.vector_store %arg10[%c1_142, %322, %c0_143], %325 {strides = array<i32>} : memref<2x16x128xf32, #tpu.memory_space<vmem>>, vector<1x8x128xf32>,
    }
    %c2_i32_133 = arith.constant 2 : i32
    return
  }
  func.func @transform_0(%arg0: i32) -> (i32, i32, i32) {
    %c0_i32 = arith.constant 0 : i32
    %c0_i32_0 = arith.constant 0 : i32
    %c0_i32_1 = arith.constant 0 : i32
    return %c0_i32, %arg0, %c0_i32_0 : i32, i32, i32
  }
  func.func @transform_1(%arg0: i32) -> (i32, i32) {
    %c0_i32 = arith.constant 0 : i32
    %c0_i32_0 = arith.constant 0 : i32
    %c0_i32_1 = arith.constant 0 : i32
    return %c0_i32, %c0_i32_0 : i32, i32
  }
  func.func @transform_2(%arg0: i32) -> i32 {
    %c0_i32 = arith.constant 0 : i32
    %c0_i32_0 = arith.constant 0 : i32
    return %c0_i32 : i32
  }
  func.func @transform_3(%arg0: i32) -> (i32, i32) {
    %c0_i32 = arith.constant 0 : i32
    %c0_i32_0 = arith.constant 0 : i32
    %c0_i32_1 = arith.constant 0 : i32
    return %c0_i32, %c0_i32_0 : i32, i32
  }
  func.func @transform_4(%arg0: i32) -> i32 {
    %c0_i32 = arith.constant 0 : i32
    %c0_i32_0 = arith.constant 0 : i32
    return %c0_i32 : i32
  }
  func.func @transform_5(%arg0: i32) -> (i32, i32) {
    %c0_i32 = arith.constant 0 : i32
    %c0_i32_0 = arith.constant 0 : i32
    %c0_i32_1 = arith.constant 0 : i32
    return %c0_i32, %c0_i32_0 : i32, i32
  }
  func.func @transform_6(%arg0: i32) -> i32 {
    %c0_i32 = arith.constant 0 : i32
    %c0_i32_0 = arith.constant 0 : i32
    return %c0_i32 : i32
  }
  func.func @transform_7(%arg0: i32) -> (i32, i32) {
    %c0_i32 = arith.constant 0 : i32
    %c0_i32_0 = arith.constant 0 : i32
    %c0_i32_1 = arith.constant 0 : i32
    return %c0_i32, %c0_i32_0 : i32, i32
  }
  func.func @transform_8(%arg0: i32) -> i32 {
    %c0_i32 = arith.constant 0 : i32
    %c0_i32_0 = arith.constant 0 : i32
    return %c0_i32 : i32
  }
  func.func @transform_9(%arg0: i32) -> (i32, i32, i32) {
    %c0_i32 = arith.constant 0 : i32
    %c0_i32_0 = arith.constant 0 : i32
    %c0_i32_1 = arith.constant 0 : i32
    return %c0_i32, %arg0, %c0_i32_0 : i32, i32, i32
  }
}

</mosaic_0001>

<llo_original>
// kernel: tpu_custom_call.1
$region0: #{tpu_custom_call.1}
  #allocation0 [shape = 'u32[]', space=smem, size = 0x4, offset = 0x4, fixed_abs, tag = 'smem constant byte address 0x4 - core index']
  #allocation1 [shape = 'u32[144,128]{1,0:T(1,128)}', space=vmem, size = 0x12000, scoped, tag = 'internal scratch']
  #allocation2 [shape = 'f32[1]{0:T(128)S(6)}', space=smem, size = 0x200, scoped, tag = 'scoped memory for tpu_custom_call.1']
  #allocation18 [shape = 's32[]', space=sflag, size = 0x4, offset = 0, fixed_abs, tag = 'sflag constant byte address 0x0 - dummy sync flag']
  #allocation20 [shape = 's32[]', space=sflag, size = 0x4, offset = 0, fixed_abs, tag = 'sflag constant byte address 0x0 - dummy sync flag']
  %s0 = inlined_call_operand.hbm [shape: f32[2,32,128], index: 0, kind: input, shape index: {}]
  %s1 = inlined_call_operand.vmem [shape: f32[10,2], index: 1, kind: input, shape index: {}]
  %s2 = inlined_call_operand.vmem [shape: f32[10], index: 2, kind: input, shape index: {}]
  %s3 = inlined_call_operand.vmem [shape: f32[1,10], index: 3, kind: input, shape index: {}]
  %s4 = inlined_call_operand.<no memory space> [shape: f32[1], index: 4, kind: input, shape index: {}]
  %s5 = inlined_call_operand.vmem [shape: f32[10,1], index: 5, kind: input, shape index: {}]
  %s6 = inlined_call_operand.vmem [shape: f32[10], index: 6, kind: input, shape index: {}]
  %s7 = inlined_call_operand.vmem [shape: f32[2,10], index: 7, kind: input, shape index: {}]
  %s8 = inlined_call_operand.vmem [shape: f32[2], index: 8, kind: input, shape index: {}]
  %s9 = inlined_call_operand.hbm [shape: f32[2,32,128], index: 9, kind: output, shape index: {}]
  %s10 = sld [smem:[#allocation0]]
  $region108: #{tpu_custom_call.1} parent=0
    _
  %s12 = ssub.s32 1, %s10
  %s13 = scalar_select 0, %s12, %s10
  %14 = sst [smem:[#allocation2]] %s4
  $region1: #{tpu_custom_call.1} parent=0
    #allocation3 [shape = 'u8[32768]{0}', space=vmem, size = 0x8000, scoped, tag = 'input window, operand 0']
    #allocation4 [shape = 's32[2]{0}', space=sflag, size = 0x8, scoped, tag = 'scoped memory for tpu_custom_call.1']
    #allocation5 [shape = 's32[2]{0}', space=sflag, size = 0x8, scoped, tag = 'scoped memory for tpu_custom_call.1']
    #allocation6 [shape = 's32[2]{0}', space=sflag, size = 0x8, scoped, tag = 'scoped memory for tpu_custom_call.1']
    #allocation7 [shape = 'u8[8192]{0}', space=smem, size = 0x2000, scoped, tag = 'input window, operand 1, single buffered']
    #allocation8 [shape = 'u8[512]{0}', space=smem, size = 0x200, scoped, tag = 'input window, operand 2, single buffered']
    #allocation9 [shape = 's32[1]{0}', space=sflag, size = 0x4, scoped, tag = 'scoped memory for tpu_custom_call.1']
    #allocation10 [shape = 'u8[512]{0}', space=smem, size = 0x200, scoped, tag = 'input window, operand 3, single buffered']
    #allocation11 [shape = 'u8[8192]{0}', space=smem, size = 0x2000, scoped, tag = 'input window, operand 5, single buffered']
    #allocation12 [shape = 's32[1]{0}', space=sflag, size = 0x4, scoped, tag = 'scoped memory for tpu_custom_call.1']
    #allocation13 [shape = 'u8[512]{0}', space=smem, size = 0x200, scoped, tag = 'input window, operand 6, single buffered']
    #allocation14 [shape = 'u8[1024]{0}', space=smem, size = 0x400, scoped, tag = 'input window, operand 7, single buffered']
    #allocation15 [shape = 's32[1]{0}', space=sflag, size = 0x4, scoped, tag = 'scoped memory for tpu_custom_call.1']
    #allocation16 [shape = 'u8[512]{0}', space=smem, size = 0x200, scoped, tag = 'input window, operand 8, single buffered']
    #allocation17 [shape = 'u8[32768]{0}', space=vmem, size = 0x8000, scoped, tag = 'output window, operand 0']
    %15 = vsyncpa [#allocation4], 0
    %s16 = scalar_lea.sflag [#allocation4], 1
    %17 = vsyncpa %s16, 0
    %18 = vsyncpa [#allocation6], 0
    %19 = vsyncpa [#allocation9], 0
    %20 = vsyncpa [#allocation12], 0
    %21 = vsyncpa [#allocation15], 0
    %22 = vsyncpa [#allocation5], 0
    %s23 = scalar_lea.sflag [#allocation5], 1
    %24 = vsyncpa %s23, 0
    loop: start=0, step=1, limit=4
    $region2: #{tpu_custom_call.1} parent=1 // loop_pre_header
      _
    $region3: #{tpu_custom_call.1} parent=1 // loop_header
      %s26 = sphi 0, %s30
      %p27 = scmp.ge.s32.totalorder %s26, 4
      %s36 = sphi 0, %s38
      %s39 = sphi 0, %s36
      %s40 = sphi 0, %s39
      %s56 = sphi 0, %s40
      %s60 = sphi 0, %s60
      %s62 = sphi 0, %s60
      %s63 = sphi 0, %s62
      %s77 = sphi 0, %s63
      %s81 = sphi 0, %s81
      %s83 = sphi 0, %s81
      %s84 = sphi 0, %s83
      %s98 = sphi 0, %s84
      %s102 = sphi 0, %s102
      %s104 = sphi 0, %s102
      %s105 = sphi 0, %s104
      %s119 = sphi 0, %s105
      %s123 = sphi 0, %s123
      %s125 = sphi 0, %s123
      %s126 = sphi 0, %s125
      %s140 = sphi 0, %s126
      %s144 = sphi 0, %s144
      %s146 = sphi 0, %s144
      %s147 = sphi 0, %s146
      %s161 = sphi 0, %s147
      %s165 = sphi 0, %s165
      %s167 = sphi 0, %s165
      %s168 = sphi 0, %s167
      %s182 = sphi 0, %s168
      %s186 = sphi 0, %s186
      %s188 = sphi 0, %s186
      %s189 = sphi 0, %s188
      %s203 = sphi 0, %s189
      %s207 = sphi 0, %s207
      %s209 = sphi 0, %s207
      %s210 = sphi 0, %s209
      %s224 = sphi 0, %s210
      %s230 = sphi 0, %s232
      %s233 = sphi 0, %s230
      %s234 = sphi 0, %s233
      %s250 = sphi 0, %s234
    $region4: #{tpu_custom_call.1} parent=1 // loop_header_branch
      %29 = sbr.rel (%p27) target = $region8
    $region5: #{tpu_custom_call.1} parent=1 // loop_body
      %s31 = ssub.s32 %s26, 1
      %s32 = ssub.s32 %s26, 2
      %s33 = sadd.s32 %s26, 1
      %s34 = ssub.s32 %s26, %s33
      %p35 = scmp.eq.s32.totalorder %s34, 0
      %s37 = sadd.s32 %s36, 1
      %s38 = scalar_select %p35, %s36, %s37
      %p41 = pneg %p35
      %p42 = scmp.eq.s32.totalorder %s26, 1
      %p43 = por %p41, %p42
      %p44 = scmp.ne.s32.totalorder %s36, %s39
      %p45 = scmp.eq.s32.totalorder %s26, 0
      %p46 = por %p44, %p45
      %p47 = scmp.ne.s32.totalorder %s36, %s39
      %p48 = scmp.eq.s32.totalorder %s31, 1
      %p49 = por %p47, %p48
      %p50 = scmp.ne.s32.totalorder %s39, %s40
      %p51 = scmp.eq.s32.totalorder %s31, 0
      %p52 = por %p50, %p51
      %p53 = scmp.ne.s32.totalorder %s39, %s40
      %p54 = scmp.eq.s32.totalorder %s32, 1
      %p55 = por %p53, %p54
      %p57 = scmp.ne.s32.totalorder %s40, %s56
      %p58 = scmp.eq.s32.totalorder %s32, 0
      %p59 = por %p57, %p58
      %s61 = sadd.s32 %s60, 1
      %p64 = scmp.eq.s32.totalorder %s26, 1
      %p65 = scmp.ne.s32.totalorder %s60, %s62
      %p66 = scmp.eq.s32.totalorder %s26, 0
      %p67 = por %p65, %p66
      %p68 = scmp.ne.s32.totalorder %s60, %s62
      %p69 = scmp.eq.s32.totalorder %s31, 1
      %p70 = por %p68, %p69
      %p71 = scmp.ne.s32.totalorder %s62, %s63
      %p72 = scmp.eq.s32.totalorder %s31, 0
      %p73 = por %p71, %p72
      %p74 = scmp.ne.s32.totalorder %s62, %s63
      %p75 = scmp.eq.s32.totalorder %s32, 1
      %p76 = por %p74, %p75
      %p78 = scmp.ne.s32.totalorder %s63, %s77
      %p79 = scmp.eq.s32.totalorder %s32, 0
      %p80 = por %p78, %p79
      %s82 = sadd.s32 %s81, 1
      %p85 = scmp.eq.s32.totalorder %s26, 1
      %p86 = scmp.ne.s32.totalorder %s81, %s83
      %p87 = scmp.eq.s32.totalorder %s26, 0
      %p88 = por %p86, %p87
      %p89 = scmp.ne.s32.totalorder %s81, %s83
      %p90 = scmp.eq.s32.totalorder %s31, 1
      %p91 = por %p89, %p90
      %p92 = scmp.ne.s32.totalorder %s83, %s84
      %p93 = scmp.eq.s32.totalorder %s31, 0
      %p94 = por %p92, %p93
      %p95 = scmp.ne.s32.totalorder %s83, %s84
      %p96 = scmp.eq.s32.totalorder %s32, 1
      %p97 = por %p95, %p96
      %p99 = scmp.ne.s32.totalorder %s84, %s98
      %p100 = scmp.eq.s32.totalorder %s32, 0
      %p101 = por %p99, %p100
      %s103 = sadd.s32 %s102, 1
      %p106 = scmp.eq.s32.totalorder %s26, 1
      %p107 = scmp.ne.s32.totalorder %s102, %s104
      %p108 = scmp.eq.s32.totalorder %s26, 0
      %p109 = por %p107, %p108
      %p110 = scmp.ne.s32.totalorder %s102, %s104
      %p111 = scmp.eq.s32.totalorder %s31, 1
      %p112 = por %p110, %p111
      %p113 = scmp.ne.s32.totalorder %s104, %s105
      %p114 = scmp.eq.s32.totalorder %s31, 0
      %p115 = por %p113, %p114
      %p116 = scmp.ne.s32.totalorder %s104, %s105
      %p117 = scmp.eq.s32.totalorder %s32, 1
      %p118 = por %p116, %p117
      %p120 = scmp.ne.s32.totalorder %s105, %s119
      %p121 = scmp.eq.s32.totalorder %s32, 0
      %p122 = por %p120, %p121
      %s124 = sadd.s32 %s123, 1
      %p127 = scmp.eq.s32.totalorder %s26, 1
      %p128 = scmp.ne.s32.totalorder %s123, %s125
      %p129 = scmp.eq.s32.totalorder %s26, 0
      %p130 = por %p128, %p129
      %p131 = scmp.ne.s32.totalorder %s123, %s125
      %p132 = scmp.eq.s32.totalorder %s31, 1
      %p133 = por %p131, %p132
      %p134 = scmp.ne.s32.totalorder %s125, %s126
      %p135 = scmp.eq.s32.totalorder %s31, 0
      %p136 = por %p134, %p135
      %p137 = scmp.ne.s32.totalorder %s125, %s126
      %p138 = scmp.eq.s32.totalorder %s32, 1
      %p139 = por %p137, %p138
      %p141 = scmp.ne.s32.totalorder %s126, %s140
      %p142 = scmp.eq.s32.totalorder %s32, 0
      %p143 = por %p141, %p142
      %s145 = sadd.s32 %s144, 1
      %p148 = scmp.eq.s32.totalorder %s26, 1
      %p149 = scmp.ne.s32.totalorder %s144, %s146
      %p150 = scmp.eq.s32.totalorder %s26, 0
      %p151 = por %p149, %p150
      %p152 = scmp.ne.s32.totalorder %s144, %s146
      %p153 = scmp.eq.s32.totalorder %s31, 1
      %p154 = por %p152, %p153
      %p155 = scmp.ne.s32.totalorder %s146, %s147
      %p156 = scmp.eq.s32.totalorder %s31, 0
      %p157 = por %p155, %p156
      %p158 = scmp.ne.s32.totalorder %s146, %s147
      %p159 = scmp.eq.s32.totalorder %s32, 1
      %p160 = por %p158, %p159
      %p162 = scmp.ne.s32.totalorder %s147, %s161
      %p163 = scmp.eq.s32.totalorder %s32, 0
      %p164 = por %p162, %p163
      %s166 = sadd.s32 %s165, 1
      %p169 = scmp.eq.s32.totalorder %s26, 1
      %p170 = scmp.ne.s32.totalorder %s165, %s167
      %p171 = scmp.eq.s32.totalorder %s26, 0
      %p172 = por %p170, %p171
      %p173 = scmp.ne.s32.totalorder %s165, %s167
      %p174 = scmp.eq.s32.totalorder %s31, 1
      %p175 = por %p173, %p174
      %p176 = scmp.ne.s32.totalorder %s167, %s168
      %p177 = scmp.eq.s32.totalorder %s31, 0
      %p178 = por %p176, %p177
      %p179 = scmp.ne.s32.totalorder %s167, %s168
      %p180 = scmp.eq.s32.totalorder %s32, 1
      %p181 = por %p179, %p180
      %p183 = scmp.ne.s32.totalorder %s168, %s182
      %p184 = scmp.eq.s32.totalorder %s32, 0
      %p185 = por %p183, %p184
      %s187 = sadd.s32 %s186, 1
      %p190 = scmp.eq.s32.totalorder %s26, 1
      %p191 = scmp.ne.s32.totalorder %s186, %s188
      %p192 = scmp.eq.s32.totalorder %s26, 0
      %p193 = por %p191, %p192
      %p194 = scmp.ne.s32.totalorder %s186, %s188
      %p195 = scmp.eq.s32.totalorder %s31, 1
      %p196 = por %p194, %p195
      %p197 = scmp.ne.s32.totalorder %s188, %s189
      %p198 = scmp.eq.s32.totalorder %s31, 0
      %p199 = por %p197, %p198
      %p200 = scmp.ne.s32.totalorder %s188, %s189
      %p201 = scmp.eq.s32.totalorder %s32, 1
      %p202 = por %p200, %p201
      %p204 = scmp.ne.s32.totalorder %s189, %s203
      %p205 = scmp.eq.s32.totalorder %s32, 0
      %p206 = por %p204, %p205
      %s208 = sadd.s32 %s207, 1
      %p211 = scmp.eq.s32.totalorder %s26, 1
      %p212 = scmp.ne.s32.totalorder %s207, %s209
      %p213 = scmp.eq.s32.totalorder %s26, 0
      %p214 = por %p212, %p213
      %p215 = scmp.ne.s32.totalorder %s207, %s209
      %p216 = scmp.eq.s32.totalorder %s31, 1
      %p217 = por %p215, %p216
      %p218 = scmp.ne.s32.totalorder %s209, %s210
      %p219 = scmp.eq.s32.totalorder %s31, 0
      %p220 = por %p218, %p219
      %p221 = scmp.ne.s32.totalorder %s209, %s210
      %p222 = scmp.eq.s32.totalorder %s32, 1
      %p223 = por %p221, %p222
      %p225 = scmp.ne.s32.totalorder %s210, %s224
      %p226 = scmp.eq.s32.totalorder %s32, 0
      %p227 = por %p225, %p226
      %s228 = ssub.s32 %s26, %s33
      %p229 = scmp.eq.s32.totalorder %s228, 0
      %s231 = sadd.s32 %s230, 1
      %s232 = scalar_select %p229, %s230, %s231
      %p235 = pneg %p229
      %p236 = scmp.eq.s32.totalorder %s26, 1
      %p237 = por %p235, %p236
      %p238 = scmp.ne.s32.totalorder %s230, %s233
      %p239 = scmp.eq.s32.totalorder %s26, 0
      %p240 = por %p238, %p239
      %p241 = scmp.ne.s32.totalorder %s230, %s233
      %p242 = scmp.eq.s32.totalorder %s31, 1
      %p243 = por %p241, %p242
      %p244 = scmp.ne.s32.totalorder %s233, %s234
      %p245 = scmp.eq.s32.totalorder %s31, 0
      %p246 = por %p244, %p245
      %p247 = scmp.ne.s32.totalorder %s233, %s234
      %p248 = scmp.eq.s32.totalorder %s32, 1
      %p249 = por %p247, %p248
      %p251 = scmp.ne.s32.totalorder %s234, %s250
      %p252 = scmp.eq.s32.totalorder %s32, 0
      %p253 = por %p251, %p252
      %p254 = scmp.le.s32.totalorder 1, %s26
      %p255 = scmp.lt.s32.totalorder %s26, 3
      %p256 = pnand %p254, %p255
      %p257 = pneg %p256
      // Predicated region
      $region9: #{tpu_custom_call.1} parent=5 // pred_check
        _
      $region10: #{tpu_custom_call.1} parent=5 // pred_check_branch
        %259 = sbr.rel (%p256) target = $region12
      $region11: #{tpu_custom_call.1} parent=5 // pred_region
        %s260 = ssub.s32 %s26, 1
        // Predicated region
        $region13: #{tpu_custom_call.1} parent=11 // pred_check
          %p261 = pneg %p73
        $region14: #{tpu_custom_call.1} parent=11 // pred_check_branch
          %263 = sbr.rel (%p261) target = $region16
        $region15: #{tpu_custom_call.1} parent=11 // pred_region
          %s265 = ssub.s32 256, 256
          %266 = vsyncadd [#allocation6], %s265
          %s267 = sshll.u32 %s1, 4
          %s268 = int_to_ptr.vmem [resolvable:$true] %s267
          %273 = dma.vmem_to_smem %s268, 256, [#allocation7], [#allocation6], 128, 128, 8
        $region16: #{tpu_custom_call.1} parent=11 // pred_fallthru
          _
        // Predicated region
        $region17: #{tpu_custom_call.1} parent=11 // pred_check
          %p274 = pneg %p94
        $region18: #{tpu_custom_call.1} parent=11 // pred_check_branch
          %276 = sbr.rel (%p274) target = $region20
        $region19: #{tpu_custom_call.1} parent=11 // pred_region
          %s278 = ssub.s32 16, 16
          %279 = vsyncadd [#allocation9], %s278
          %s281 = sshll.u32 %s2, 4
          %s282 = int_to_ptr.vmem [resolvable:$true] %s281
          %284 = dma.vmem_to_smem %s282, 16, [#allocation8], [#allocation9]
        $region20: #{tpu_custom_call.1} parent=11 // pred_fallthru
          _
        // Predicated region
        $region21: #{tpu_custom_call.1} parent=11 // pred_check
          %p285 = pneg %p115
        $region22: #{tpu_custom_call.1} parent=11 // pred_check_branch
          %287 = sbr.rel (%p285) target = $region24
        $region23: #{tpu_custom_call.1} parent=11 // pred_region
          %s289 = ssub.s32 16, 16
          %290 = vsyncadd [#allocation9], %s289
          %s292 = sshll.u32 %s3, 4
          %s293 = int_to_ptr.vmem [resolvable:$true] %s292
          %295 = dma.vmem_to_smem %s293, 16, [#allocation10], [#allocation9]
        $region24: #{tpu_custom_call.1} parent=11 // pred_fallthru
          _
        // Predicated region
        $region25: #{tpu_custom_call.1} parent=11 // pred_check
          %p296 = pneg %p136
        $region26: #{tpu_custom_call.1} parent=11 // pred_check_branch
          %298 = sbr.rel (%p296) target = $region28
        $region27: #{tpu_custom_call.1} parent=11 // pred_region
          _
        $region28: #{tpu_custom_call.1} parent=11 // pred_fallthru
          _
        // Predicated region
        $region29: #{tpu_custom_call.1} parent=11 // pred_check
          %p299 = pneg %p157
        $region30: #{tpu_custom_call.1} parent=11 // pred_check_branch
          %301 = sbr.rel (%p299) target = $region32
        $region31: #{tpu_custom_call.1} parent=11 // pred_region
          %s303 = ssub.s32 256, 256
          %304 = vsyncadd [#allocation12], %s303
          %s305 = sshll.u32 %s5, 4
          %s306 = int_to_ptr.vmem [resolvable:$true] %s305
          %311 = dma.vmem_to_smem %s306, 256, [#allocation11], [#allocation12], 128, 128, 8
        $region32: #{tpu_custom_call.1} parent=11 // pred_fallthru
          _
        // Predicated region
        $region33: #{tpu_custom_call.1} parent=11 // pred_check
          %p312 = pneg %p178
        $region34: #{tpu_custom_call.1} parent=11 // pred_check_branch
          %314 = sbr.rel (%p312) target = $region36
        $region35: #{tpu_custom_call.1} parent=11 // pred_region
          %s316 = ssub.s32 16, 16
          %317 = vsyncadd [#allocation12], %s316
          %s319 = sshll.u32 %s6, 4
          %s320 = int_to_ptr.vmem [resolvable:$true] %s319
          %322 = dma.vmem_to_smem %s320, 16, [#allocation13], [#allocation12]
        $region36: #{tpu_custom_call.1} parent=11 // pred_fallthru
          _
        // Predicated region
        $region37: #{tpu_custom_call.1} parent=11 // pred_check
          %p323 = pneg %p199
        $region38: #{tpu_custom_call.1} parent=11 // pred_check_branch
          %325 = sbr.rel (%p323) target = $region40
        $region39: #{tpu_custom_call.1} parent=11 // pred_region
          %s327 = ssub.s32 32, 32
          %328 = vsyncadd [#allocation15], %s327
          %s330 = sshll.u32 %s7, 4
          %s331 = int_to_ptr.vmem [resolvable:$true] %s330
          %333 = dma.vmem_to_smem %s331, 32, [#allocation14], [#allocation15]
        $region40: #{tpu_custom_call.1} parent=11 // pred_fallthru
          _
        // Predicated region
        $region41: #{tpu_custom_call.1} parent=11 // pred_check
          %p334 = pneg %p220
        $region42: #{tpu_custom_call.1} parent=11 // pred_check_branch
          %336 = sbr.rel (%p334) target = $region44
        $region43: #{tpu_custom_call.1} parent=11 // pred_region
          %s338 = ssub.s32 16, 16
          %339 = vsyncadd [#allocation15], %s338
          %s341 = sshll.u32 %s8, 4
          %s342 = int_to_ptr.vmem [resolvable:$true] %s341
          %344 = dma.vmem_to_smem %s342, 16, [#allocation16], [#allocation15]
        $region44: #{tpu_custom_call.1} parent=11 // pred_fallthru
          _
      $region12: #{tpu_custom_call.1} parent=5 // pred_fallthru
        _
      %p345 = scmp.lt.s32.totalorder %s26, 2
      // Predicated region
      $region45: #{tpu_custom_call.1} parent=5 // pred_check
        %p346 = pneg %p345
      $region46: #{tpu_custom_call.1} parent=5 // pred_check_branch
        %348 = sbr.rel (%p346) target = $region48
      $region47: #{tpu_custom_call.1} parent=5 // pred_region
        // Predicated region
        $region49: #{tpu_custom_call.1} parent=47 // pred_check
          %p349 = pneg %p46
        $region50: #{tpu_custom_call.1} parent=47 // pred_check_branch
          %351 = sbr.rel (%p349) target = $region52
        $region51: #{tpu_custom_call.1} parent=47 // pred_region
          #allocation19 [shape = 'u32[6]{0}', space=smem, size = 0x18, scoped, tag = 'DMA stride descriptor']
          %s352 = sand.u32 %s36, 1
          %s353 = scalar_lea.sflag [#allocation4], %s352
          %s354 = sand.u32 %s36, 1
          %s355 = smul.addr %s354, 32
          %s356 = scalar_lea.vmem [#allocation3], %s355
          %s357 = smul.u32 2, %s26
          %s359 = ssub.s32 512, 512
          %360 = vsyncadd %s353, %s359
          %s361 = smul.addr %s357, 128
          %s362 = scalar_lea.hbm %s0, %s361
          %s364 = sshll.u32 1, 14
          %s365 = sxor.u32 4294967295, %s364
          %s367 = sld [smem:[#allocation0]]
          %s368 = sadd.s32 2, %s367
          %s370 = sshll.u32 7, 26
          %s371 = sxor.u32 4294967295, %s370
          %s372 = sand.u32 0, %s371
          %s373 = sshll.u32 %s368, 26
          %s374 = sor.u32 %s372, %s373
          %s375 = sshll.u32 %s356, 4
          %s376 = int_to_ptr.vmem [resolvable:$true] %s375
          %382 = sst [smem:[#allocation19]] 512
          %s383 = scalar_lea.smem [#allocation19], 1
          %384 = sst [smem:[%s383]] 256
          %s385 = scalar_lea.smem [#allocation19], 2
          %386 = sst [smem:[%s385]] 2
          %s387 = scalar_lea.smem [#allocation19], 3
          %388 = sst [smem:[%s387]] 128
          %s389 = scalar_lea.smem [#allocation19], 4
          %390 = sst [smem:[%s389]] 128
          %s391 = scalar_lea.smem [#allocation19], 5
          %392 = sst [smem:[%s391]] 8
          %394 = dma.general %s362, 512, %s376, %s353, 131072, [#allocation19], %s374, 0
        $region52: #{tpu_custom_call.1} parent=47 // pred_fallthru
          _
      $region48: #{tpu_custom_call.1} parent=5 // pred_fallthru
        _
      %p395 = scmp.le.s32.totalorder 1, %s26
      %p396 = scmp.lt.s32.totalorder %s26, 3
      %p397 = pnand %p395, %p396
      %p398 = pneg %p397
      // Predicated region
      $region53: #{tpu_custom_call.1} parent=5 // pred_check
        _
      $region54: #{tpu_custom_call.1} parent=5 // pred_check_branch
        %400 = sbr.rel (%p397) target = $region56
      $region55: #{tpu_custom_call.1} parent=5 // pred_region
        %s401 = ssub.s32 %s26, 1
        %s402 = sand.u32 %s39, 1
        %s403 = scalar_lea.sflag [#allocation4], %s402
        %s404 = sand.u32 %s39, 1
        %s405 = smul.addr %s404, 32
        %s406 = scalar_lea.vmem [#allocation3], %s405
        // Predicated region
        $region57: #{tpu_custom_call.1} parent=55 // pred_check
          %p407 = pneg %p52
        $region58: #{tpu_custom_call.1} parent=55 // pred_check_branch
          %409 = sbr.rel (%p407) target = $region60
        $region59: #{tpu_custom_call.1} parent=55 // pred_region
          %410 = dma.done %s403, 512
        $region60: #{tpu_custom_call.1} parent=55 // pred_fallthru
          _
        // Predicated region
        $region61: #{tpu_custom_call.1} parent=55 // pred_check
          %p411 = pneg %p73
        $region62: #{tpu_custom_call.1} parent=55 // pred_check_branch
          %413 = sbr.rel (%p411) target = $region64
        $region63: #{tpu_custom_call.1} parent=55 // pred_region
          %414 = dma.done [#allocation6], 256
        $region64: #{tpu_custom_call.1} parent=55 // pred_fallthru
          _
        // Predicated region
        $region65: #{tpu_custom_call.1} parent=55 // pred_check
          %p415 = pneg %p94
        $region66: #{tpu_custom_call.1} parent=55 // pred_check_branch
          %417 = sbr.rel (%p415) target = $region68
        $region67: #{tpu_custom_call.1} parent=55 // pred_region
          %418 = dma.done [#allocation9], 16
        $region68: #{tpu_custom_call.1} parent=55 // pred_fallthru
          _
        // Predicated region
        $region69: #{tpu_custom_call.1} parent=55 // pred_check
          %p419 = pneg %p115
        $region70: #{tpu_custom_call.1} parent=55 // pred_check_branch
          %421 = sbr.rel (%p419) target = $region72
        $region71: #{tpu_custom_call.1} parent=55 // pred_region
          %422 = dma.done [#allocation9], 16
        $region72: #{tpu_custom_call.1} parent=55 // pred_fallthru
          _
        // Predicated region
        $region73: #{tpu_custom_call.1} parent=55 // pred_check
          %p423 = pneg %p157
        $region74: #{tpu_custom_call.1} parent=55 // pred_check_branch
          %425 = sbr.rel (%p423) target = $region76
        $region75: #{tpu_custom_call.1} parent=55 // pred_region
          %426 = dma.done [#allocation12], 256
        $region76: #{tpu_custom_call.1} parent=55 // pred_fallthru
          _
        // Predicated region
        $region77: #{tpu_custom_call.1} parent=55 // pred_check
          %p427 = pneg %p178
        $region78: #{tpu_custom_call.1} parent=55 // pred_check_branch
          %429 = sbr.rel (%p427) target = $region80
        $region79: #{tpu_custom_call.1} parent=55 // pred_region
          %430 = dma.done [#allocation12], 16
        $region80: #{tpu_custom_call.1} parent=55 // pred_fallthru
          _
        // Predicated region
        $region81: #{tpu_custom_call.1} parent=55 // pred_check
          %p431 = pneg %p199
        $region82: #{tpu_custom_call.1} parent=55 // pred_check_branch
          %433 = sbr.rel (%p431) target = $region84
        $region83: #{tpu_custom_call.1} parent=55 // pred_region
          %434 = dma.done [#allocation15], 32
        $region84: #{tpu_custom_call.1} parent=55 // pred_fallthru
          _
        // Predicated region
        $region85: #{tpu_custom_call.1} parent=55 // pred_check
          %p435 = pneg %p220
        $region86: #{tpu_custom_call.1} parent=55 // pred_check_branch
          %437 = sbr.rel (%p435) target = $region88
        $region87: #{tpu_custom_call.1} parent=55 // pred_region
          %438 = dma.done [#allocation15], 16
        $region88: #{tpu_custom_call.1} parent=55 // pred_fallthru
          _
        %439 = sfence
        %s440 = sand.u32 %s39, 1
        %s441 = scalar_lea.sflag [#allocation4], %s440
        %s442 = sand.u32 %s39, 1
        %s443 = smul.addr %s442, 32
        %s444 = scalar_lea.vmem [#allocation3], %s443
        %p445 = pneg %p52
        %p446 = pneg %p49
        %p447 = pneg %p73
        %p448 = pneg %p70
        %p449 = pneg %p94
        %p450 = pneg %p91
        %p451 = pneg %p115
        %p452 = pneg %p112
        %p453 = pneg %p136
        %p454 = pneg %p133
        %p455 = pneg %p157
        %p456 = pneg %p154
        %p457 = pneg %p178
        %p458 = pneg %p175
        %p459 = pneg %p199
        %p460 = pneg %p196
        %p461 = pneg %p220
        %p462 = pneg %p217
        %p463 = pneg %p246
        %p464 = pneg %p243
        %s465 = sand.u32 %s233, 1
        %s466 = scalar_lea.sflag [#allocation5], %s465
        %s467 = sand.u32 %s233, 1
        %s468 = smul.addr %s467, 32
        %s469 = scalar_lea.vmem [#allocation17], %s468
        %s470 = smul.u32 2, %s31
        %s471 = smul.u32 2, %s31
        %s472 = sld [smem:[#allocation7]]
        %s473 = sld [smem:[#allocation7 + $0x1]]
        %s474 = sld [smem:[#allocation7 + $0x80]]
        %s475 = sld [smem:[#allocation7 + $0x81]]
        %s476 = sld [smem:[#allocation7 + $0x100]]
        %s477 = sld [smem:[#allocation7 + $0x101]]
        %s478 = sld [smem:[#allocation7 + $0x180]]
        %s479 = sld [smem:[#allocation7 + $0x181]]
        %s480 = sld [smem:[#allocation7 + $0x200]]
        %s481 = sld [smem:[#allocation7 + $0x201]]
        %s482 = sld [smem:[#allocation7 + $0x280]]
        %s483 = sld [smem:[#allocation7 + $0x281]]
        %s484 = sld [smem:[#allocation7 + $0x300]]
        %s485 = sld [smem:[#allocation7 + $0x301]]
        %s486 = sld [smem:[#allocation7 + $0x380]]
        %s487 = sld [smem:[#allocation7 + $0x381]]
        %s488 = sld [smem:[#allocation7 + $0x400]]
        %s489 = sld [smem:[#allocation7 + $0x401]]
        %s490 = sld [smem:[#allocation7 + $0x480]]
        %s491 = sld [smem:[#allocation7 + $0x481]]
        %s492 = sld [smem:[#allocation8]]
        %s493 = sld [smem:[#allocation8 + $0x1]]
        %s494 = sld [smem:[#allocation8 + $0x2]]
        %s495 = sld [smem:[#allocation8 + $0x3]]
        %s496 = sld [smem:[#allocation8 + $0x4]]
        %s497 = sld [smem:[#allocation8 + $0x5]]
        %s498 = sld [smem:[#allocation8 + $0x6]]
        %s499 = sld [smem:[#allocation8 + $0x7]]
        %s500 = sld [smem:[#allocation8 + $0x8]]
        %s501 = sld [smem:[#allocation8 + $0x9]]
        %s502 = sld [smem:[#allocation10]]
        %s503 = sld [smem:[#allocation10 + $0x1]]
        %s504 = sld [smem:[#allocation10 + $0x2]]
        %s505 = sld [smem:[#allocation10 + $0x3]]
        %s506 = sld [smem:[#allocation10 + $0x4]]
        %s507 = sld [smem:[#allocation10 + $0x5]]
        %s508 = sld [smem:[#allocation10 + $0x6]]
        %s509 = sld [smem:[#allocation10 + $0x7]]
        %s510 = sld [smem:[#allocation10 + $0x8]]
        %s511 = sld [smem:[#allocation10 + $0x9]]
        %s512 = sld [smem:[#allocation2]]
        %s513 = sld [smem:[#allocation11]]
        %s514 = sld [smem:[#allocation11 + $0x80]]
        %s515 = sld [smem:[#allocation11 + $0x100]]
        %s516 = sld [smem:[#allocation11 + $0x180]]
        %s517 = sld [smem:[#allocation11 + $0x200]]
        %s518 = sld [smem:[#allocation11 + $0x280]]
        %s519 = sld [smem:[#allocation11 + $0x300]]
        %s520 = sld [smem:[#allocation11 + $0x380]]
        %s521 = sld [smem:[#allocation11 + $0x400]]
        %s522 = sld [smem:[#allocation11 + $0x480]]
        %s523 = sld [smem:[#allocation13]]
        %s524 = sld [smem:[#allocation13 + $0x1]]
        %s525 = sld [smem:[#allocation13 + $0x2]]
        %s526 = sld [smem:[#allocation13 + $0x3]]
        %s527 = sld [smem:[#allocation13 + $0x4]]
        %s528 = sld [smem:[#allocation13 + $0x5]]
        %s529 = sld [smem:[#allocation13 + $0x6]]
        %s530 = sld [smem:[#allocation13 + $0x7]]
        %s531 = sld [smem:[#allocation13 + $0x8]]
        %s532 = sld [smem:[#allocation13 + $0x9]]
        %s533 = sld [smem:[#allocation14]]
        %s534 = sld [smem:[#allocation14 + $0x1]]
        %s535 = sld [smem:[#allocation14 + $0x2]]
        %s536 = sld [smem:[#allocation14 + $0x3]]
        %s537 = sld [smem:[#allocation14 + $0x4]]
        %s538 = sld [smem:[#allocation14 + $0x5]]
        %s539 = sld [smem:[#allocation14 + $0x6]]
        %s540 = sld [smem:[#allocation14 + $0x7]]
        %s541 = sld [smem:[#allocation14 + $0x8]]
        %s542 = sld [smem:[#allocation14 + $0x9]]
        %s543 = sld [smem:[#allocation14 + $0x80]]
        %s544 = sld [smem:[#allocation14 + $0x81]]
        %s545 = sld [smem:[#allocation14 + $0x82]]
        %s546 = sld [smem:[#allocation14 + $0x83]]
        %s547 = sld [smem:[#allocation14 + $0x84]]
        %s548 = sld [smem:[#allocation14 + $0x85]]
        %s549 = sld [smem:[#allocation14 + $0x86]]
        %s550 = sld [smem:[#allocation14 + $0x87]]
        %s551 = sld [smem:[#allocation14 + $0x88]]
        %s552 = sld [smem:[#allocation14 + $0x89]]
        %s553 = sld [smem:[#allocation16]]
        %s554 = sld [smem:[#allocation16 + $0x1]]
        loop: start=0, step=1, limit=2
        $region89: #{tpu_custom_call.1} parent=55 // loop_pre_header
          _
        $region90: #{tpu_custom_call.1} parent=55 // loop_header
          %s556 = sphi 0, %s560
          %p557 = scmp.ge.s32.totalorder %s556, 2
        $region91: #{tpu_custom_call.1} parent=55 // loop_header_branch
          %559 = sbr.rel (%p557) target = $region95
        $region92: #{tpu_custom_call.1} parent=55 // loop_body
          %s561 = smul.u32 %s556, 8
          %s562 = scalar_lea.vmem %s406, %s561 [#allocation3]
          %v563 = vld [vmem:[%s562] sm:$0xff]
          %s564 = sadd.s32 %s561, 16
          %s565 = scalar_lea.vmem %s406, %s564 [#allocation3]
          %v566 = vld [vmem:[%s565] sm:$0xff]
          %v567 = vstv %s472
          %v568 = vmul.f32 %v563, %v567
          %v569 = vstv %s473
          %v570 = vmul.f32 %v566, %v569
          %v571 = vadd.f32 %v568, %v570
          %v572 = vstv %s492
          %v573 = vadd.f32 %v571, %v572
          %v574 = vtanh.pop %v573
          %v575 = vstv %s474
          %v576 = vmul.f32 %v563, %v575
          %v577 = vstv %s475
          %v578 = vmul.f32 %v566, %v577
          %v579 = vadd.f32 %v576, %v578
          %v580 = vstv %s493
          %v581 = vadd.f32 %v579, %v580
          %v582 = vtanh.pop %v581
          %v583 = vstv %s476
          %v584 = vmul.f32 %v563, %v583
          %v585 = vstv %s477
          %v586 = vmul.f32 %v566, %v585
          %v587 = vadd.f32 %v584, %v586
          %v588 = vstv %s494
          %v589 = vadd.f32 %v587, %v588
          %v590 = vtanh.pop %v589
          %v591 = vstv %s478
          %v592 = vmul.f32 %v563, %v591
          %v593 = vstv %s479
          %v594 = vmul.f32 %v566, %v593
          %v595 = vadd.f32 %v592, %v594
          %v596 = vstv %s495
          %v597 = vadd.f32 %v595, %v596
          %v598 = vtanh.pop %v597
          %v599 = vstv %s480
          %v600 = vmul.f32 %v563, %v599
          %v601 = vstv %s481
          %v602 = vmul.f32 %v566, %v601
          %v603 = vadd.f32 %v600, %v602
          %v604 = vstv %s496
          %v605 = vadd.f32 %v603, %v604
          %v606 = vtanh.pop %v605
          %v607 = vstv %s482
          %v608 = vmul.f32 %v563, %v607
          %v609 = vstv %s483
          %v610 = vmul.f32 %v566, %v609
          %v611 = vadd.f32 %v608, %v610
          %v612 = vstv %s497
          %v613 = vadd.f32 %v611, %v612
          %v614 = vtanh.pop %v613
          %v615 = vstv %s484
          %v616 = vmul.f32 %v563, %v615
          %v617 = vstv %s485
          %v618 = vmul.f32 %v566, %v617
          %v619 = vadd.f32 %v616, %v618
          %v620 = vstv %s498
          %v621 = vadd.f32 %v619, %v620
          %v622 = vtanh.pop %v621
          %v623 = vstv %s486
          %v624 = vmul.f32 %v563, %v623
          %v625 = vstv %s487
          %v626 = vmul.f32 %v566, %v625
          %v627 = vadd.f32 %v624, %v626
          %v628 = vstv %s499
          %v629 = vadd.f32 %v627, %v628
          %v630 = vtanh.pop %v629
          %v631 = vstv %s488
          %v632 = vmul.f32 %v563, %v631
          %v633 = vstv %s489
          %v634 = vmul.f32 %v566, %v633
          %v635 = vadd.f32 %v632, %v634
          %v636 = vstv %s500
          %v637 = vadd.f32 %v635, %v636
          %v638 = vtanh.pop %v637
          %v639 = vstv %s490
          %v640 = vmul.f32 %v563, %v639
          %v641 = vstv %s491
          %v642 = vmul.f32 %v566, %v641
          %v643 = vadd.f32 %v640, %v642
          %v644 = vstv %s501
          %v645 = vadd.f32 %v643, %v644
          %v646 = vtanh.pop %v645
          %v647 = vstv %s502
          %v648 = vmul.f32 %v574, %v647
          %v649 = vstv %s503
          %v650 = vmul.f32 %v582, %v649
          %v651 = vadd.f32 %v648, %v650
          %v652 = vstv %s504
          %v653 = vmul.f32 %v590, %v652
          %v654 = vadd.f32 %v651, %v653
          %v655 = vstv %s505
          %v656 = vmul.f32 %v598, %v655
          %v657 = vadd.f32 %v654, %v656
          %v658 = vstv %s506
          %v659 = vmul.f32 %v606, %v658
          %v660 = vadd.f32 %v657, %v659
          %v661 = vstv %s507
          %v662 = vmul.f32 %v614, %v661
          %v663 = vadd.f32 %v660, %v662
          %v664 = vstv %s508
          %v665 = vmul.f32 %v622, %v664
          %v666 = vadd.f32 %v663, %v665
          %v667 = vstv %s509
          %v668 = vmul.f32 %v630, %v667
          %v669 = vadd.f32 %v666, %v668
          %v670 = vstv %s510
          %v671 = vmul.f32 %v638, %v670
          %v672 = vadd.f32 %v669, %v671
          %v673 = vstv %s511
          %v674 = vmul.f32 %v646, %v673
          %v675 = vadd.f32 %v672, %v674
          %v676 = vstv %s512
          %v677 = vadd.f32 %v675, %v676
          %v678 = vtanh.pop %v677
          %v679 = vstv %s513
          %v680 = vmul.f32 %v678, %v679
          %v681 = vstv %s523
          %v682 = vadd.f32 %v680, %v681
          %v683 = vtanh.pop %v682
          %v684 = vstv %s514
          %v685 = vmul.f32 %v678, %v684
          %v686 = vstv %s524
          %v687 = vadd.f32 %v685, %v686
          %v688 = vtanh.pop %v687
          %v689 = vstv %s515
          %v690 = vmul.f32 %v678, %v689
          %v691 = vstv %s525
          %v692 = vadd.f32 %v690, %v691
          %v693 = vtanh.pop %v692
          %v694 = vstv %s516
          %v695 = vmul.f32 %v678, %v694
          %v696 = vstv %s526
          %v697 = vadd.f32 %v695, %v696
          %v698 = vtanh.pop %v697
          %v699 = vstv %s517
          %v700 = vmul.f32 %v678, %v699
          %v701 = vstv %s527
          %v702 = vadd.f32 %v700, %v701
          %v703 = vtanh.pop %v702
          %v704 = vstv %s518
          %v705 = vmul.f32 %v678, %v704
          %v706 = vstv %s528
          %v707 = vadd.f32 %v705, %v706
          %v708 = vtanh.pop %v707
          %v709 = vstv %s519
          %v710 = vmul.f32 %v678, %v709
          %v711 = vstv %s529
          %v712 = vadd.f32 %v710, %v711
          %v713 = vtanh.pop %v712
          %v714 = vstv %s520
          %v715 = vmul.f32 %v678, %v714
          %v716 = vstv %s530
          %v717 = vadd.f32 %v715, %v716
          %v718 = vtanh.pop %v717
          %v719 = vstv %s521
          %v720 = vmul.f32 %v678, %v719
          %v721 = vstv %s531
          %v722 = vadd.f32 %v720, %v721
          %v723 = vtanh.pop %v722
          %v724 = vstv %s522
          %v725 = vmul.f32 %v678, %v724
          %v726 = vstv %s532
          %v727 = vadd.f32 %v725, %v726
          %v728 = vtanh.pop %v727
          %v729 = vstv %s533
          %v730 = vmul.f32 %v683, %v729
          %v731 = vstv %s534
          %v732 = vmul.f32 %v688, %v731
          %v733 = vadd.f32 %v730, %v732
          %v734 = vstv %s535
          %v735 = vmul.f32 %v693, %v734
          %v736 = vadd.f32 %v733, %v735
          %v737 = vstv %s536
          %v738 = vmul.f32 %v698, %v737
          %v739 = vadd.f32 %v736, %v738
          %v740 = vstv %s537
          %v741 = vmul.f32 %v703, %v740
          %v742 = vadd.f32 %v739, %v741
          %v743 = vstv %s538
          %v744 = vmul.f32 %v708, %v743
          %v745 = vadd.f32 %v742, %v744
          %v746 = vstv %s539
          %v747 = vmul.f32 %v713, %v746
          %v748 = vadd.f32 %v745, %v747
          %v749 = vstv %s540
          %v750 = vmul.f32 %v718, %v749
          %v751 = vadd.f32 %v748, %v750
          %v752 = vstv %s541
          %v753 = vmul.f32 %v723, %v752
          %v754 = vadd.f32 %v751, %v753
          %v755 = vstv %s542
          %v756 = vmul.f32 %v728, %v755
          %v757 = vadd.f32 %v754, %v756
          %v758 = vstv %s553
          %v759 = vadd.f32 %v757, %v758
          %v760 = vstv %s543
          %v761 = vmul.f32 %v683, %v760
          %v762 = vstv %s544
          %v763 = vmul.f32 %v688, %v762
          %v764 = vadd.f32 %v761, %v763
          %v765 = vstv %s545
          %v766 = vmul.f32 %v693, %v765
          %v767 = vadd.f32 %v764, %v766
          %v768 = vstv %s546
          %v769 = vmul.f32 %v698, %v768
          %v770 = vadd.f32 %v767, %v769
          %v771 = vstv %s547
          %v772 = vmul.f32 %v703, %v771
          %v773 = vadd.f32 %v770, %v772
          %v774 = vstv %s548
          %v775 = vmul.f32 %v708, %v774
          %v776 = vadd.f32 %v773, %v775
          %v777 = vstv %s549
          %v778 = vmul.f32 %v713, %v777
          %v779 = vadd.f32 %v776, %v778
          %v780 = vstv %s550
          %v781 = vmul.f32 %v718, %v780
          %v782 = vadd.f32 %v779, %v781
          %v783 = vstv %s551
          %v784 = vmul.f32 %v723, %v783
          %v785 = vadd.f32 %v782, %v784
          %v786 = vstv %s552
          %v787 = vmul.f32 %v728, %v786
          %v788 = vadd.f32 %v785, %v787
          %v789 = vstv %s554
          %v790 = vadd.f32 %v788, %v789
          %s791 = scalar_lea.vmem %s469, %s561 [#allocation17]
          %792 = vst [vmem:[%s791] sm:$0xff] %v759
          %s793 = scalar_lea.vmem %s469, %s564 [#allocation17]
          %794 = vst [vmem:[%s793] sm:$0xff] %v790
        $region93: #{tpu_custom_call.1} parent=55 // loop_footer
          %s560 = sadd.s32 1, %s556
        $region94: #{tpu_custom_call.1} parent=55 // loop_footer_branch
          %555 = sbr.rel target = $region90
        $region95: #{tpu_custom_call.1} parent=55 // loop_exit
          _
        %s795 = sand.u32 %s233, 1
        %s796 = scalar_lea.sflag [#allocation5], %s795
        %s797 = sand.u32 %s233, 1
        %s798 = smul.addr %s797, 32
        %s799 = scalar_lea.vmem [#allocation17], %s798
        // Predicated region
        $region96: #{tpu_custom_call.1} parent=55 // pred_check
          %p800 = pneg %p243
        $region97: #{tpu_custom_call.1} parent=55 // pred_check_branch
          %802 = sbr.rel (%p800) target = $region99
        $region98: #{tpu_custom_call.1} parent=55 // pred_region
          #allocation21 [shape = 'u32[6]{0}', space=smem, size = 0x18, scoped, tag = 'DMA stride descriptor']
          %s803 = smul.u32 2, %s31
          %s805 = ssub.s32 512, 512
          %806 = vsyncadd %s796, %s805
          %s807 = smul.addr %s803, 128
          %s808 = scalar_lea.hbm %s9, %s807
          %s810 = sshll.u32 1, 14
          %s811 = sxor.u32 4294967295, %s810
          %s814 = sshll.u32 7, 18
          %s815 = sxor.u32 4294967295, %s814
          %s816 = sand.u32 0, %s815
          %s818 = sor.u32 %s816, 0
          %s819 = sshll.u32 %s799, 4
          %s820 = int_to_ptr.vmem [resolvable:$true] %s819
          %826 = sst [smem:[#allocation21]] 256
          %s827 = scalar_lea.smem [#allocation21], 1
          %828 = sst [smem:[%s827]] 512
          %s829 = scalar_lea.smem [#allocation21], 2
          %830 = sst [smem:[%s829]] 2
          %s831 = scalar_lea.smem [#allocation21], 3
          %832 = sst [smem:[%s831]] 128
          %s833 = scalar_lea.smem [#allocation21], 4
          %834 = sst [smem:[%s833]] 128
          %s835 = scalar_lea.smem [#allocation21], 5
          %836 = sst [smem:[%s835]] 8
          %838 = dma.general %s820, 512, %s808, %s796, 131072, [#allocation21], %s818, 0
        $region99: #{tpu_custom_call.1} parent=55 // pred_fallthru
          _
      $region56: #{tpu_custom_call.1} parent=5 // pred_fallthru
        _
      %p839 = scmp.le.s32.totalorder 2, %s26
      // Predicated region
      $region100: #{tpu_custom_call.1} parent=5 // pred_check
        %p840 = pneg %p839
      $region101: #{tpu_custom_call.1} parent=5 // pred_check_branch
        %842 = sbr.rel (%p840) target = $region103
      $region102: #{tpu_custom_call.1} parent=5 // pred_region
        %s843 = ssub.s32 %s26, 2
        // Predicated region
        $region104: #{tpu_custom_call.1} parent=102 // pred_check
          %p844 = pneg %p249
        $region105: #{tpu_custom_call.1} parent=102 // pred_check_branch
          %846 = sbr.rel (%p844) target = $region107
        $region106: #{tpu_custom_call.1} parent=102 // pred_region
          %s847 = sand.u32 %s234, 1
          %s848 = scalar_lea.sflag [#allocation5], %s847
          %s849 = sand.u32 %s234, 1
          %s850 = smul.addr %s849, 32
          %s851 = scalar_lea.vmem [#allocation17], %s850
          %852 = dma.done %s848, 512
        $region107: #{tpu_custom_call.1} parent=102 // pred_fallthru
          _
      $region103: #{tpu_custom_call.1} parent=5 // pred_fallthru
        _
    $region6: #{tpu_custom_call.1} parent=1 // loop_footer
      %s30 = sadd.s32 1, %s26
    $region7: #{tpu_custom_call.1} parent=1 // loop_footer_branch
      %25 = sbr.rel target = $region3
    $region8: #{tpu_custom_call.1} parent=1 // loop_exit
      _
    %853 = vsyncpa [#allocation4], 1
    %s854 = scalar_lea.sflag [#allocation4], 1
    %855 = vsyncpa %s854, 1
    %856 = vsyncpa [#allocation5], 1
    %s857 = scalar_lea.sflag [#allocation5], 1
    %858 = vsyncpa %s857, 1
    %859 = vsyncpa [#allocation6], 1
    %s860 = scalar_lea.sflag [#allocation6], 1
    %861 = vsyncpa %s860, 1
    %862 = vsyncpa [#allocation9], 1
    %863 = vsyncpa [#allocation12], 1
    %864 = vsyncpa [#allocation15], 1

</llo_original>
